<compile_context>
chip_gen: v5e
topology: v5e:2x2
jax: 0.10.0
libtpu: 0.0.40
codegen_flags: <defaults>
</compile_context>

<pallas_src>
import math
from functools import partial

import jax
import jax.numpy as jnp
from jax import lax
from jax.experimental import pallas as pl
from jax.experimental.pallas import tpu as pltpu


DEFAULT_MASK_VALUE = -0.7 * float(jnp.finfo(jnp.float32).max)


def _attention_kernel(x_ref, wq_ref, bq_ref, wkv_ref, bkv_ref, wp_ref, bp_ref,
                      y_ref, *rest, hd, compute_dtype, with_att):
    if with_att:
        att_ref, kv_sc, mask_sc, acc_ref = rest
    else:
        att_ref = None
        kv_sc, mask_sc, acc_ref = rest

    qi = pl.program_id(1)                 # q-tile index
    g = pl.program_id(2)                  # head-group index (reduction axis)
    n_groups = pl.num_programs(2)

    T = x_ref.shape[1]
    tq = y_ref.shape[1]
    W = wq_ref.shape[2]                   # group width = G * hd
    G = W // hd
    f32 = jnp.float32
    bf16_math = compute_dtype == jnp.bfloat16

    # ---- Per (batch, group), first q-tile only: project K and V for the whole
    # sequence once and cache them in VMEM (reused by every q-tile of this batch).
    @pl.when(qi == 0)
    def _():
        x_full = x_ref[0]                                              # (T, C)
        kv = jnp.dot(x_full, wkv_ref[g], preferred_element_type=f32) + bkv_ref[g]
        kv_sc[g] = kv.astype(compute_dtype)                            # (T, 2W)

    # ---- Per (batch, q-tile), first group only: build the additive causal mask
    # once (reused by every head of every group) and zero the y accumulator.
    # Rebuilt per batch on purpose: the batch axis may be megacore-split, so each
    # core's scratch must be initialized on a condition it is guaranteed to hit.
    @pl.when(g == 0)
    def _():
        rows = qi * tq + lax.broadcasted_iota(jnp.int32, (tq, T), 0)
        cols = lax.broadcasted_iota(jnp.int32, (tq, T), 1)
        mask_sc[...] = jnp.where(cols <= rows, 0.0, DEFAULT_MASK_VALUE).astype(f32)
        acc_ref[...] = jnp.zeros_like(acc_ref)

    # ---- Q projection for this q-tile / head group (1/sqrt(hd) pre-folded into Wq).
    q_start = pl.multiple_of(qi * tq, tq)
    x_q = x_ref[0, pl.ds(q_start, tq), :]                              # (tq, C)
    q = (jnp.dot(x_q, wq_ref[g], preferred_element_type=f32)
         + bq_ref[g]).astype(compute_dtype)                            # (tq, W)

    kv = kv_sc[g]                                                      # (T, 2W)
    mask = mask_sc[...]                                                # (tq, T)

    # ---- Per-head attention inside the group (G is small and static).
    yh_parts = []
    for h in range(G):
        k_h = kv[:, h * hd:(h + 1) * hd]                               # (T, hd)
        v_h = kv[:, W + h * hd:W + (h + 1) * hd]                       # (T, hd)
        q_h = q[:, h * hd:(h + 1) * hd]                                # (tq, hd)
        # Scores without materializing k.T (contract head_dim of both operands).
        s = lax.dot_general(q_h, k_h, dimension_numbers=(((1,), (1,)), ((), ())),
                            preferred_element_type=f32)                # (tq, T)
        s = s + mask                                                   # hoisted mask
        m = jnp.max(s, axis=-1, keepdims=True)
        if bf16_math:
            # bf16 exp roughly doubles EUP throughput on v6e/v7x; row-sum and
            # normalization stay in f32.  (On v5e prefer compute_dtype=f32.)
            p = jnp.exp((s - m).astype(jnp.bfloat16)).astype(f32)
        else:
            p = jnp.exp(s - m)
        att_h = p * pl.reciprocal(jnp.sum(p, axis=-1, keepdims=True),
                                  approx=bf16_math)
        if att_ref is not None:
            att_ref[0, h] = att_h.astype(att_ref.dtype)
        yh_parts.append(jnp.dot(att_h.astype(compute_dtype), v_h,
                                preferred_element_type=f32))           # (tq, hd)

    # ---- One wide output-projection matmul for the whole group (K = G*hd), then
    # accumulate this group's contribution: y = sum_g (concat_h yh) @ Wp[g] + bp.
    y_g = jnp.concatenate(yh_parts, axis=-1).astype(compute_dtype)     # (tq, W)
    acc_ref[...] += jnp.dot(y_g, wp_ref[g], preferred_element_type=f32)

    @pl.when(g == n_groups - 1)
    def _():
        y_ref[0] = (acc_ref[...] + bp_ref[...]).astype(y_ref.dtype)


def _pick_n_groups(n_head, hd, target_width):
    # Largest number of groups dividing n_head such that the group width
    # (n_head/n_groups)*hd still fills the MXU (>= target_width lanes).
    best = 1
    for ng in range(1, n_head + 1):
        if n_head % ng == 0 and (n_head // ng) * hd >= target_width:
            best = ng
    return best


def _pick_block_q(T):
    if T <= 512:
        return T
    for cand in (512, 256, 128):
        if T % cand == 0:
            return cand
    return T


def _vmem_limit_bytes(T, C, tq, W, G, n_groups, compute_dtype, att_itemsize):
    cds = jnp.dtype(compute_dtype).itemsize
    est = 0
    est += 2 * T * C * cds                       # x (double-buffered)
    est += 2 * 4 * C * C * cds                   # resident weights (~4*C^2 elements)
    est += 2 * tq * C * 4                        # y output block
    est += 2 * G * tq * T * att_itemsize         # att output block (0 when disabled)
    est += n_groups * T * 2 * W * cds            # K/V cache scratch
    est += tq * T * 4 + tq * C * 4               # mask + accumulator scratch
    est += 4 * tq * T * 4 + T * 2 * W * cds      # live temporaries (s, p, att_h, kv)
    est = int(1.5 * est) + (8 << 20)             # pipelining / compiler headroom
    try:
        cap = int(getattr(pltpu.get_tpu_info(), "vmem_capacity_bytes", 64 << 20))
    except Exception:
        cap = 64 << 20                           # conservative (v7x per-core) fallback
    # Never request the full physical VMEM: leave ~20% for compiler scratch,
    # semaphores and extra pipeline buffers.
    return int(min(max(est, 32 << 20), int(0.8 * cap)))


def causal_self_attention(x, wq, bq, wk, bk, wv, bv, wp, bp, n_head,
                          compute_dtype=jnp.bfloat16, att_dtype=None,
                          with_att=True, block_q=None, n_groups=None,
                          mxu_target_width=256):
    B, T, C = x.shape
    assert C % n_head == 0
    hd = C // n_head
    if n_groups is None:
        n_groups = _pick_n_groups(n_head, hd, mxu_target_width)
    assert n_head % n_groups == 0
    G = n_head // n_groups
    W = G * hd
    if block_q is None:
        block_q = _pick_block_q(T)
    assert T % block_q == 0
    tq = block_q
    n_q_tiles = T // tq
    if att_dtype is None:
        att_dtype = jnp.float32            # module semantics; pass bf16 for perf
    f32 = jnp.float32
    scale = 1.0 / math.sqrt(hd)

    # One-time weight layout prep: group the head columns, fold the attention scale
    # into the query projection, and pre-cast weights (and x) to the MXU compute
    # dtype so the kernel does no per-step casts and DMA bytes are halved in bf16.
    def cols_by_group(w):                  # (C, C) -> (n_groups, C, W)
        return w.reshape(C, n_groups, W).transpose(1, 0, 2)

    def bias_by_group(b):                  # (1, C) -> (n_groups, 1, W)
        return b.reshape(1, n_groups, W).transpose(1, 0, 2)

    wq_g = (cols_by_group(wq) * scale).astype(compute_dtype)
    bq_g = (bias_by_group(bq) * scale).astype(f32)
    wkv_g = jnp.concatenate([cols_by_group(wk), cols_by_group(wv)],
                            axis=-1).astype(compute_dtype)             # (ng, C, 2W)
    bkv_g = jnp.concatenate([bias_by_group(bk), bias_by_group(bv)],
                            axis=-1).astype(f32)                       # (ng, 1, 2W)
    wp_g = wp.reshape(n_groups, W, C).astype(compute_dtype)            # rows by group
    bp_f = bp.astype(f32)
    x_in = x.astype(compute_dtype)

    out_shape = [jax.ShapeDtypeStruct((B, T, C), x.dtype)]
    out_specs = [pl.BlockSpec((1, tq, C), lambda b, qi, g: (b, qi, 0))]
    if with_att:
        out_shape.append(jax.ShapeDtypeStruct((B, n_head, T, T), att_dtype))
        out_specs.append(pl.BlockSpec((1, G, tq, T), lambda b, qi, g: (b, g, qi, 0)))
    att_itemsize = jnp.dtype(att_dtype).itemsize if with_att else 0

    kernel = partial(_attention_kernel, hd=hd, compute_dtype=compute_dtype,
                     with_att=with_att)

    outs = pl.pallas_call(
        kernel,
        out_shape=tuple(out_shape),
        grid_spec=pltpu.PrefetchScalarGridSpec(
            num_scalar_prefetch=0,
            grid=(B, n_q_tiles, n_groups),
            in_specs=[
                pl.BlockSpec((1, T, C), lambda b, qi, g: (b, 0, 0)),            # x
                pl.BlockSpec((n_groups, C, W), lambda b, qi, g: (0, 0, 0)),     # Wq
                pl.BlockSpec((n_groups, 1, W), lambda b, qi, g: (0, 0, 0)),     # bq
                pl.BlockSpec((n_groups, C, 2 * W), lambda b, qi, g: (0, 0, 0)), # Wkv
                pl.BlockSpec((n_groups, 1, 2 * W), lambda b, qi, g: (0, 0, 0)), # bkv
                pl.BlockSpec((n_groups, W, C), lambda b, qi, g: (0, 0, 0)),     # Wp
                pl.BlockSpec((1, C), lambda b, qi, g: (0, 0)),                  # bp
            ],
            out_specs=tuple(out_specs),
            scratch_shapes=[
                pltpu.VMEM((n_groups, T, 2 * W), compute_dtype),  # K/V cache
                pltpu.VMEM((tq, T), jnp.float32),                 # additive causal mask
                pltpu.VMEM((tq, C), jnp.float32),                 # y accumulator
            ],
        ),
        compiler_params=pltpu.CompilerParams(
            # Batch is the only "parallel" axis: the q-tile axis must stay
            # "arbitrary" because the K/V cache is filled at qi==0 and reused across
            # q-tiles, and the group axis is the y-projection reduction (kept last).
            dimension_semantics=("parallel", "arbitrary", "arbitrary"),
            vmem_limit_bytes=_vmem_limit_bytes(T, C, tq, W, G, n_groups,
                                               compute_dtype, att_itemsize),
        ),
    )(x_in, wq_g, bq_g, wkv_g, bkv_g, wp_g, bp_f)

    if with_att:
        y, att = outs
        return y, att
    (y,) = outs
    return y


def reference(x, wq, bq, wk, bk, wv, bv, wp, bp, n_head):
    # Pure-JAX reference mirroring the PyTorch forward (eval mode), f32.
    B, T, C = x.shape
    hd = C // n_head

    def lin(x, w, b):
        return x @ w + b[0]

    q = lin(x, wq, bq).reshape(B, T, n_head, hd).transpose(0, 2, 1, 3)
    k = lin(x, wk, bk).reshape(B, T, n_head, hd).transpose(0, 2, 1, 3)
    v = lin(x, wv, bv).reshape(B, T, n_head, hd).transpose(0, 2, 1, 3)
    att = jnp.einsum("bhqd,bhkd->bhqk", q, k) / math.sqrt(hd)
    mask = jnp.tril(jnp.ones((T, T), bool))
    att = jnp.where(mask[None, None], att, -jnp.inf)
    att = jax.nn.softmax(att, axis=-1)
    y = jnp.einsum("bhqk,bhkd->bhqd", att, v)
    y = y.transpose(0, 2, 1, 3).reshape(B, T, C)
    y = lin(y, wp, bp)
    return y, att


if __name__ == "__main__":
    key = jax.random.PRNGKey(0)

    def make_params(k, C):
        keys = jax.random.split(k, 8)
        init = lambda kk, shape: (jax.random.normal(kk, shape, jnp.float32)
                                  / math.sqrt(shape[0]))
        wq = init(keys[0], (C, C)); bq = init(keys[1], (1, C)) * 0.1
        wk = init(keys[2], (C, C)); bk = init(keys[3], (1, C)) * 0.1
        wv = init(keys[4], (C, C)); bv = init(keys[5], (1, C)) * 0.1
        wp = init(keys[6], (C, C)); bp = init(keys[7], (1, C)) * 0.1
        return wq, bq, wk, bk, wv, bv, wp, bp

    # ---- Config 1: batch=2, seq=8, n_embd=32, n_head=4 (head_dim=8). ----
    B, T, C, H = 2, 8, 32, 4
    k1, k2, key = jax.random.split(key, 3)
    x = jax.random.normal(k1, (B, T, C), jnp.float32)
    params = make_params(k2, C)
    y_gold, att_gold = reference(x, *params, H)

    # f32 MXU-operand path: tight structural check.
    y32, att32 = causal_self_attention(x, *params, H, compute_dtype=jnp.float32)
    jax.block_until_ready((y32, att32))
    assert jnp.allclose(y32, y_gold, atol=2e-4, rtol=1e-4), "y mismatch (f32)"
    assert jnp.allclose(att32, att_gold, atol=2e-5, rtol=1e-4), "att mismatch (f32)"

    # bf16 path (default perf config) with bf16 att writeback.
    y16, att16 = causal_self_attention(x, *params, H,
                                       compute_dtype=jnp.bfloat16,
                                       att_dtype=jnp.bfloat16)
    jax.block_until_ready((y16, att16))
    assert jnp.allclose(y16, y_gold, atol=2e-1, rtol=2e-1), "y mismatch (bf16)"
    assert jnp.allclose(att16.astype(jnp.float32), att_gold,
                        atol=1e-1, rtol=1e-1), "att mismatch (bf16)"

    # y-only path (att output skipped entirely).
    y_only = causal_self_attention(x, *params, H, with_att=False)
    jax.block_until_ready(y_only)
    assert y_only.shape == (B, T, C)
    assert jnp.allclose(y_only, y_gold, atol=2e-1, rtol=2e-1), "y mismatch (no-att)"

    # ---- Config 2: exercises head grouping (n_groups=2) and q-tiling (2 tiles). ----
    B2, T2, C2, H2 = 2, 16, 64, 4
    k3, k4, key = jax.random.split(key, 3)
    x2 = jax.random.normal(k3, (B2, T2, C2), jnp.float32)
    params2 = make_params(k4, C2)
    y_gold2, att_gold2 = reference(x2, *params2, H2)
    y2, att2 = causal_self_attention(x2, *params2, H2, compute_dtype=jnp.float32,
                                     block_q=8, n_groups=2)
    jax.block_until_ready((y2, att2))
    assert jnp.allclose(y2, y_gold2, atol=2e-4, rtol=1e-4), "y mismatch (tiled f32)"
    assert jnp.allclose(att2, att_gold2, atol=2e-5, rtol=1e-4), "att mismatch (tiled f32)"

    print("KERNEL_OK")
</pallas_src>

<mosaic_0001>
module attributes {stable_mosaic.version = 11 : i64} {
  func.func @_attention_kernel(%arg0: i32, %arg1: i32, %arg2: i32, %arg3: memref<1x8x32xf32, #tpu.memory_space<vmem>>, %arg4: memref<1x32x32xf32, #tpu.memory_space<vmem>>, %arg5: memref<1x1x32xf32, #tpu.memory_space<vmem>>, %arg6: memref<1x32x64xf32, #tpu.memory_space<vmem>>, %arg7: memref<1x1x64xf32, #tpu.memory_space<vmem>>, %arg8: memref<1x32x32xf32, #tpu.memory_space<vmem>>, %arg9: memref<1x32xf32, #tpu.memory_space<vmem>>, %arg10: memref<1x8x32xf32, #tpu.memory_space<vmem>>, %arg11: memref<1x4x8x8xf32, #tpu.memory_space<vmem>>, %arg12: memref<1x8x64xf32, #tpu.memory_space<vmem>>, %arg13: memref<8x8xf32, #tpu.memory_space<vmem>>, %arg14: memref<8x32xf32, #tpu.memory_space<vmem>>) attributes {dimension_semantics = [#tpu.dimension_semantics<parallel>, #tpu.dimension_semantics<arbitrary>, #tpu.dimension_semantics<arbitrary>], iteration_bounds = array<i64: 2, 1, 1>, scalar_prefetch = 0 : i64, scratch_operands = 3 : i64, tpu.core_type = #tpu.core_type<tc>, window_params = [{transform_indices = @transform_0, window_bounds = array<i64: 1, 8, 32>}, {pipeline_mode = #tpu.pipeline_mode<synchronous>, transform_indices = @transform_1, window_bounds = array<i64: 1, 32, 32>}, {pipeline_mode = #tpu.pipeline_mode<synchronous>, transform_indices = @transform_2, window_bounds = array<i64: 1, 1, 32>}, {pipeline_mode = #tpu.pipeline_mode<synchronous>, transform_indices = @transform_3, window_bounds = array<i64: 1, 32, 64>}, {pipeline_mode = #tpu.pipeline_mode<synchronous>, transform_indices = @transform_4, window_bounds = array<i64: 1, 1, 64>}, {pipeline_mode = #tpu.pipeline_mode<synchronous>, transform_indices = @transform_5, window_bounds = array<i64: 1, 32, 32>}, {pipeline_mode = #tpu.pipeline_mode<synchronous>, transform_indices = @transform_6, window_bounds = array<i64: 1, 32>}, {transform_indices = @transform_7, window_bounds = array<i64: 1, 8, 32>}, {transform_indices = @transform_8, window_bounds = array<i64: 1, 4, 8, 8>}]} {
    %c0_i32 = arith.constant 0 : i32
    %0 = arith.cmpi eq, %arg1, %c0_i32 : i32
    %1 = arith.extui %0 : i1 to i32
    %c0_i32_0 = arith.constant 0 : i32
    %2 = arith.cmpi ne, %1, %c0_i32_0 : i32
    scf.if %2 {
      %c0_50 = arith.constant 0 : index
      %c0_51 = arith.constant 0 : index
      %c0_52 = arith.constant 0 : index
      %111 = vector.load %arg3[%c0_50, %c0_51, %c0_52] : memref<1x8x32xf32, #tpu.memory_space<vmem>>, vector<1x8x32xf32>
      %112 = vector.shape_cast %111 : vector<1x8x32xf32> to vector<8x32xf32>
      %113 = arith.index_cast %arg2 : i32 to index
      %c0_53 = arith.constant 0 : index
      %c0_54 = arith.constant 0 : index
      %114 = vector.load %arg6[%113, %c0_53, %c0_54] : memref<1x32x64xf32, #tpu.memory_space<vmem>>, vector<1x32x64xf32>
      %115 = vector.shape_cast %114 : vector<1x32x64xf32> to vector<32x64xf32>
      %cst_55 = arith.constant dense<0.000000e+00> : vector<8x64xf32>
      %116 = tpu.matmul %112, %115, %cst_55 {dimension_numbers = #tpu.dot_dimension_numbers<[1], [0], [0], [1], [0, 0, 1, 1], [], []>} : vector<8x32xf32>, vector<32x64xf32>, vector<8x64xf32> -> vector<8x64xf32>
      %117 = arith.index_cast %arg2 : i32 to index
      %c0_56 = arith.constant 0 : index
      %c0_57 = arith.constant 0 : index
      %118 = vector.load %arg7[%117, %c0_56, %c0_57] : memref<1x1x64xf32, #tpu.memory_space<vmem>>, vector<1x1x64xf32>
      %119 = vector.shape_cast %118 : vector<1x1x64xf32> to vector<1x64xf32>
      %120 = vector.broadcast %119 : vector<1x64xf32> to vector<8x64xf32>
      %121 = arith.addf %116, %120 : vector<8x64xf32>
      %122 = arith.index_cast %arg2 : i32 to index
      %c0_58 = arith.constant 0 : index
      %c0_59 = arith.constant 0 : index
      %123 = vector.load %arg12[%122, %c0_58, %c0_59] : memref<1x8x64xf32, #tpu.memory_space<vmem>>, vector<1x8x64xf32>
      %124 = vector.shape_cast %123 : vector<1x8x64xf32> to vector<8x64xf32>
      %125 = vector.shape_cast %121 : vector<8x64xf32> to vector<1x8x64xf32>
      tpu.vector_store %arg12[%122, %c0_58, %c0_59], %125 {strides = array<i32>} : memref<1x8x64xf32, #tpu.memory_space<vmem>>, vector<1x8x64xf32>,
    } else {
    }
    %c0_i32_1 = arith.constant 0 : i32
    %3 = arith.cmpi eq, %arg2, %c0_i32_1 : i32
    %4 = arith.extui %3 : i1 to i32
    %c0_i32_2 = arith.constant 0 : i32
    %5 = arith.cmpi ne, %4, %c0_i32_2 : i32
    scf.if %5 {
      %c8_i32_50 = arith.constant 8 : i32
      %111 = arith.muli %arg1, %c8_i32_50 : i32
      %112 = tpu.iota {dimensions = array<i32: 0>} : vector<8x8xi32>
      %113 = vector.broadcast %111 : i32 to vector<8x8xi32>
      %114 = arith.addi %113, %112 : vector<8x8xi32>
      %115 = tpu.iota {dimensions = array<i32: 1>} : vector<8x8xi32>
      %116 = arith.cmpi sle, %115, %114 : vector<8x8xi32>
      %cst_51 = arith.constant 0.000000e+00 : f32
      %cst_52 = arith.constant -2.38197633E+38 : f32
      %117 = vector.broadcast %cst_51 : f32 to vector<8x8xf32>
      %118 = vector.broadcast %cst_52 : f32 to vector<8x8xf32>
      %119 = arith.select %116, %117, %118 : vector<8x8xi1>, vector<8x8xf32>
      %c0_53 = arith.constant 0 : index
      %c0_54 = arith.constant 0 : index
      %120 = vector.load %arg13[%c0_53, %c0_54] : memref<8x8xf32, #tpu.memory_space<vmem>>, vector<8x8xf32>
      tpu.vector_store %arg13[%c0_53, %c0_54], %119 {strides = array<i32>} : memref<8x8xf32, #tpu.memory_space<vmem>>, vector<8x8xf32>,
      %cst_55 = arith.constant 0.000000e+00 : f32
      %121 = vector.broadcast %cst_55 : f32 to vector<8x32xf32>
      %c0_56 = arith.constant 0 : index
      %c0_57 = arith.constant 0 : index
      %122 = vector.load %arg14[%c0_56, %c0_57] : memref<8x32xf32, #tpu.memory_space<vmem>>, vector<8x32xf32>
      tpu.vector_store %arg14[%c0_56, %c0_57], %121 {strides = array<i32>} : memref<8x32xf32, #tpu.memory_space<vmem>>, vector<8x32xf32>,
    } else {
    }
    %c8_i32 = arith.constant 8 : i32
    %6 = arith.muli %arg1, %c8_i32 : i32
    %7 = tpu.assume_multiple %6, 8 : i32
    %c0 = arith.constant 0 : index
    %8 = arith.index_cast %7 : i32 to index
    %c0_3 = arith.constant 0 : index
    %9 = vector.load %arg3[%c0, %8, %c0_3] : memref<1x8x32xf32, #tpu.memory_space<vmem>>, vector<1x8x32xf32>
    %10 = vector.shape_cast %9 : vector<1x8x32xf32> to vector<8x32xf32>
    %11 = arith.index_cast %arg2 : i32 to index
    %c0_4 = arith.constant 0 : index
    %c0_5 = arith.constant 0 : index
    %12 = vector.load %arg4[%11, %c0_4, %c0_5] : memref<1x32x32xf32, #tpu.memory_space<vmem>>, vector<1x32x32xf32>
    %13 = vector.shape_cast %12 : vector<1x32x32xf32> to vector<32x32xf32>
    %cst = arith.constant dense<0.000000e+00> : vector<8x32xf32>
    %14 = tpu.matmul %10, %13, %cst {dimension_numbers = #tpu.dot_dimension_numbers<[1], [0], [0], [1], [0, 0, 1, 1], [], []>} : vector<8x32xf32>, vector<32x32xf32>, vector<8x32xf32> -> vector<8x32xf32>
    %15 = arith.index_cast %arg2 : i32 to index
    %c0_6 = arith.constant 0 : index
    %c0_7 = arith.constant 0 : index
    %16 = vector.load %arg5[%15, %c0_6, %c0_7] : memref<1x1x32xf32, #tpu.memory_space<vmem>>, vector<1x1x32xf32>
    %17 = vector.shape_cast %16 : vector<1x1x32xf32> to vector<1x32xf32>
    %18 = vector.broadcast %17 : vector<1x32xf32> to vector<8x32xf32>
    %19 = arith.addf %14, %18 : vector<8x32xf32>
    %20 = arith.index_cast %arg2 : i32 to index
    %c0_8 = arith.constant 0 : index
    %c0_9 = arith.constant 0 : index
    %21 = vector.load %arg12[%20, %c0_8, %c0_9] : memref<1x8x64xf32, #tpu.memory_space<vmem>>, vector<1x8x64xf32>
    %22 = vector.shape_cast %21 : vector<1x8x64xf32> to vector<8x64xf32>
    %c0_10 = arith.constant 0 : index
    %c0_11 = arith.constant 0 : index
    %23 = vector.load %arg13[%c0_10, %c0_11] : memref<8x8xf32, #tpu.memory_space<vmem>>, vector<8x8xf32>
    %24 = vector.extract_strided_slice %22 {offsets = [0, 0], sizes = [8, 8], strides = [1, 1]} : vector<8x64xf32> to vector<8x8xf32>
    %25 = vector.extract_strided_slice %22 {offsets = [0, 32], sizes = [8, 8], strides = [1, 1]} : vector<8x64xf32> to vector<8x8xf32>
    %26 = vector.extract_strided_slice %19 {offsets = [0, 0], sizes = [8, 8], strides = [1, 1]} : vector<8x32xf32> to vector<8x8xf32>
    %cst_12 = arith.constant dense<0.000000e+00> : vector<8x8xf32>
    %27 = tpu.matmul %26, %24, %cst_12 {dimension_numbers = #tpu.dot_dimension_numbers<[1], [1], [0], [0], [0, 0, 1, 0], [], []>} : vector<8x8xf32>, vector<8x8xf32>, vector<8x8xf32> -> vector<8x8xf32>
    %28 = arith.addf %27, %23 : vector<8x8xf32>
    %cst_13 = arith.constant dense<0xFF800000> : vector<8xf32>
    %29 = vector.multi_reduction <maximumf>, %28, %cst_13 [1] : vector<8x8xf32> to vector<8xf32>
    %30 = vector.shape_cast %29 : vector<8xf32> to vector<8x1xf32>
    %31 = vector.broadcast %30 : vector<8x1xf32> to vector<8x8xf32>
    %32 = arith.subf %28, %31 : vector<8x8xf32>
    %33 = math.exp %32 : vector<8x8xf32>
    %cst_14 = arith.constant dense<0.000000e+00> : vector<8xf32>
    %34 = vector.multi_reduction <add>, %33, %cst_14 [1] : vector<8x8xf32> to vector<8xf32>
    %35 = vector.shape_cast %34 : vector<8xf32> to vector<8x1xf32>
    %36 = tpu.reciprocal %35 : vector<8x1xf32> -> vector<8x1xf32>
    %37 = vector.broadcast %36 : vector<8x1xf32> to vector<8x8xf32>
    %38 = arith.mulf %33, %37 : vector<8x8xf32>
    %c0_15 = arith.constant 0 : index
    %c0_16 = arith.constant 0 : index
    %c0_17 = arith.constant 0 : index
    %c0_18 = arith.constant 0 : index
    %39 = vector.load %arg11[%c0_15, %c0_16, %c0_17, %c0_18] : memref<1x4x8x8xf32, #tpu.memory_space<vmem>>, vector<1x1x8x8xf32>
    %40 = vector.shape_cast %39 : vector<1x1x8x8xf32> to vector<8x8xf32>
    %41 = vector.shape_cast %38 : vector<8x8xf32> to vector<1x1x8x8xf32>
    tpu.vector_store %arg11[%c0_15, %c0_16, %c0_17, %c0_18], %41 {strides = array<i32>} : memref<1x4x8x8xf32, #tpu.memory_space<vmem>>, vector<1x1x8x8xf32>,
    %cst_19 = arith.constant dense<0.000000e+00> : vector<8x8xf32>
    %42 = tpu.matmul %38, %25, %cst_19 {dimension_numbers = #tpu.dot_dimension_numbers<[1], [0], [0], [1], [0, 0, 1, 1], [], []>} : vector<8x8xf32>, vector<8x8xf32>, vector<8x8xf32> -> vector<8x8xf32>
    %43 = vector.extract_strided_slice %22 {offsets = [0, 8], sizes = [8, 8], strides = [1, 1]} : vector<8x64xf32> to vector<8x8xf32>
    %44 = vector.extract_strided_slice %22 {offsets = [0, 40], sizes = [8, 8], strides = [1, 1]} : vector<8x64xf32> to vector<8x8xf32>
    %45 = vector.extract_strided_slice %19 {offsets = [0, 8], sizes = [8, 8], strides = [1, 1]} : vector<8x32xf32> to vector<8x8xf32>
    %cst_20 = arith.constant dense<0.000000e+00> : vector<8x8xf32>
    %46 = tpu.matmul %45, %43, %cst_20 {dimension_numbers = #tpu.dot_dimension_numbers<[1], [1], [0], [0], [0, 0, 1, 0], [], []>} : vector<8x8xf32>, vector<8x8xf32>, vector<8x8xf32> -> vector<8x8xf32>
    %47 = arith.addf %46, %23 : vector<8x8xf32>
    %cst_21 = arith.constant dense<0xFF800000> : vector<8xf32>
    %48 = vector.multi_reduction <maximumf>, %47, %cst_21 [1] : vector<8x8xf32> to vector<8xf32>
    %49 = vector.shape_cast %48 : vector<8xf32> to vector<8x1xf32>
    %50 = vector.broadcast %49 : vector<8x1xf32> to vector<8x8xf32>
    %51 = arith.subf %47, %50 : vector<8x8xf32>
    %52 = math.exp %51 : vector<8x8xf32>
    %cst_22 = arith.constant dense<0.000000e+00> : vector<8xf32>
    %53 = vector.multi_reduction <add>, %52, %cst_22 [1] : vector<8x8xf32> to vector<8xf32>
    %54 = vector.shape_cast %53 : vector<8xf32> to vector<8x1xf32>
    %55 = tpu.reciprocal %54 : vector<8x1xf32> -> vector<8x1xf32>
    %56 = vector.broadcast %55 : vector<8x1xf32> to vector<8x8xf32>
    %57 = arith.mulf %52, %56 : vector<8x8xf32>
    %c0_23 = arith.constant 0 : index
    %c1 = arith.constant 1 : index
    %c0_24 = arith.constant 0 : index
    %c0_25 = arith.constant 0 : index
    %58 = vector.load %arg11[%c0_23, %c1, %c0_24, %c0_25] : memref<1x4x8x8xf32, #tpu.memory_space<vmem>>, vector<1x1x8x8xf32>
    %59 = vector.shape_cast %58 : vector<1x1x8x8xf32> to vector<8x8xf32>
    %60 = vector.shape_cast %57 : vector<8x8xf32> to vector<1x1x8x8xf32>
    tpu.vector_store %arg11[%c0_23, %c1, %c0_24, %c0_25], %60 {strides = array<i32>} : memref<1x4x8x8xf32, #tpu.memory_space<vmem>>, vector<1x1x8x8xf32>,
    %cst_26 = arith.constant dense<0.000000e+00> : vector<8x8xf32>
    %61 = tpu.matmul %57, %44, %cst_26 {dimension_numbers = #tpu.dot_dimension_numbers<[1], [0], [0], [1], [0, 0, 1, 1], [], []>} : vector<8x8xf32>, vector<8x8xf32>, vector<8x8xf32> -> vector<8x8xf32>
    %62 = vector.extract_strided_slice %22 {offsets = [0, 16], sizes = [8, 8], strides = [1, 1]} : vector<8x64xf32> to vector<8x8xf32>
    %63 = vector.extract_strided_slice %22 {offsets = [0, 48], sizes = [8, 8], strides = [1, 1]} : vector<8x64xf32> to vector<8x8xf32>
    %64 = vector.extract_strided_slice %19 {offsets = [0, 16], sizes = [8, 8], strides = [1, 1]} : vector<8x32xf32> to vector<8x8xf32>
    %cst_27 = arith.constant dense<0.000000e+00> : vector<8x8xf32>
    %65 = tpu.matmul %64, %62, %cst_27 {dimension_numbers = #tpu.dot_dimension_numbers<[1], [1], [0], [0], [0, 0, 1, 0], [], []>} : vector<8x8xf32>, vector<8x8xf32>, vector<8x8xf32> -> vector<8x8xf32>
    %66 = arith.addf %65, %23 : vector<8x8xf32>
    %cst_28 = arith.constant dense<0xFF800000> : vector<8xf32>
    %67 = vector.multi_reduction <maximumf>, %66, %cst_28 [1] : vector<8x8xf32> to vector<8xf32>
    %68 = vector.shape_cast %67 : vector<8xf32> to vector<8x1xf32>
    %69 = vector.broadcast %68 : vector<8x1xf32> to vector<8x8xf32>
    %70 = arith.subf %66, %69 : vector<8x8xf32>
    %71 = math.exp %70 : vector<8x8xf32>
    %cst_29 = arith.constant dense<0.000000e+00> : vector<8xf32>
    %72 = vector.multi_reduction <add>, %71, %cst_29 [1] : vector<8x8xf32> to vector<8xf32>
    %73 = vector.shape_cast %72 : vector<8xf32> to vector<8x1xf32>
    %74 = tpu.reciprocal %73 : vector<8x1xf32> -> vector<8x1xf32>
    %75 = vector.broadcast %74 : vector<8x1xf32> to vector<8x8xf32>
    %76 = arith.mulf %71, %75 : vector<8x8xf32>
    %c0_30 = arith.constant 0 : index
    %c2 = arith.constant 2 : index
    %c0_31 = arith.constant 0 : index
    %c0_32 = arith.constant 0 : index
    %77 = vector.load %arg11[%c0_30, %c2, %c0_31, %c0_32] : memref<1x4x8x8xf32, #tpu.memory_space<vmem>>, vector<1x1x8x8xf32>
    %78 = vector.shape_cast %77 : vector<1x1x8x8xf32> to vector<8x8xf32>
    %79 = vector.shape_cast %76 : vector<8x8xf32> to vector<1x1x8x8xf32>
    tpu.vector_store %arg11[%c0_30, %c2, %c0_31, %c0_32], %79 {strides = array<i32>} : memref<1x4x8x8xf32, #tpu.memory_space<vmem>>, vector<1x1x8x8xf32>,
    %cst_33 = arith.constant dense<0.000000e+00> : vector<8x8xf32>
    %80 = tpu.matmul %76, %63, %cst_33 {dimension_numbers = #tpu.dot_dimension_numbers<[1], [0], [0], [1], [0, 0, 1, 1], [], []>} : vector<8x8xf32>, vector<8x8xf32>, vector<8x8xf32> -> vector<8x8xf32>
    %81 = vector.extract_strided_slice %22 {offsets = [0, 24], sizes = [8, 8], strides = [1, 1]} : vector<8x64xf32> to vector<8x8xf32>
    %82 = vector.extract_strided_slice %22 {offsets = [0, 56], sizes = [8, 8], strides = [1, 1]} : vector<8x64xf32> to vector<8x8xf32>
    %83 = vector.extract_strided_slice %19 {offsets = [0, 24], sizes = [8, 8], strides = [1, 1]} : vector<8x32xf32> to vector<8x8xf32>
    %cst_34 = arith.constant dense<0.000000e+00> : vector<8x8xf32>
    %84 = tpu.matmul %83, %81, %cst_34 {dimension_numbers = #tpu.dot_dimension_numbers<[1], [1], [0], [0], [0, 0, 1, 0], [], []>} : vector<8x8xf32>, vector<8x8xf32>, vector<8x8xf32> -> vector<8x8xf32>
    %85 = arith.addf %84, %23 : vector<8x8xf32>
    %cst_35 = arith.constant dense<0xFF800000> : vector<8xf32>
    %86 = vector.multi_reduction <maximumf>, %85, %cst_35 [1] : vector<8x8xf32> to vector<8xf32>
    %87 = vector.shape_cast %86 : vector<8xf32> to vector<8x1xf32>
    %88 = vector.broadcast %87 : vector<8x1xf32> to vector<8x8xf32>
    %89 = arith.subf %85, %88 : vector<8x8xf32>
    %90 = math.exp %89 : vector<8x8xf32>
    %cst_36 = arith.constant dense<0.000000e+00> : vector<8xf32>
    %91 = vector.multi_reduction <add>, %90, %cst_36 [1] : vector<8x8xf32> to vector<8xf32>
    %92 = vector.shape_cast %91 : vector<8xf32> to vector<8x1xf32>
    %93 = tpu.reciprocal %92 : vector<8x1xf32> -> vector<8x1xf32>
    %94 = vector.broadcast %93 : vector<8x1xf32> to vector<8x8xf32>
    %95 = arith.mulf %90, %94 : vector<8x8xf32>
    %c0_37 = arith.constant 0 : index
    %c3 = arith.constant 3 : index
    %c0_38 = arith.constant 0 : index
    %c0_39 = arith.constant 0 : index
    %96 = vector.load %arg11[%c0_37, %c3, %c0_38, %c0_39] : memref<1x4x8x8xf32, #tpu.memory_space<vmem>>, vector<1x1x8x8xf32>
    %97 = vector.shape_cast %96 : vector<1x1x8x8xf32> to vector<8x8xf32>
    %98 = vector.shape_cast %95 : vector<8x8xf32> to vector<1x1x8x8xf32>
    tpu.vector_store %arg11[%c0_37, %c3, %c0_38, %c0_39], %98 {strides = array<i32>} : memref<1x4x8x8xf32, #tpu.memory_space<vmem>>, vector<1x1x8x8xf32>,
    %cst_40 = arith.constant dense<0.000000e+00> : vector<8x8xf32>
    %99 = tpu.matmul %95, %82, %cst_40 {dimension_numbers = #tpu.dot_dimension_numbers<[1], [0], [0], [1], [0, 0, 1, 1], [], []>} : vector<8x8xf32>, vector<8x8xf32>, vector<8x8xf32> -> vector<8x8xf32>
    %100 = tpu.concatenate %42, %61, %80, %99 in 1 : vector<8x8xf32>, vector<8x8xf32>, vector<8x8xf32>, vector<8x8xf32> -> vector<8x32xf32>
    %c0_41 = arith.constant 0 : index
    %c0_42 = arith.constant 0 : index
    %101 = vector.load %arg14[%c0_41, %c0_42] : memref<8x32xf32, #tpu.memory_space<vmem>>, vector<8x32xf32>
    %102 = arith.index_cast %arg2 : i32 to index
    %c0_43 = arith.constant 0 : index
    %c0_44 = arith.constant 0 : index
    %103 = vector.load %arg8[%102, %c0_43, %c0_44] : memref<1x32x32xf32, #tpu.memory_space<vmem>>, vector<1x32x32xf32>
    %104 = vector.shape_cast %103 : vector<1x32x32xf32> to vector<32x32xf32>
    %cst_45 = arith.constant dense<0.000000e+00> : vector<8x32xf32>
    %105 = tpu.matmul %100, %104, %cst_45 {dimension_numbers = #tpu.dot_dimension_numbers<[1], [0], [0], [1], [0, 0, 1, 1], [], []>} : vector<8x32xf32>, vector<32x32xf32>, vector<8x32xf32> -> vector<8x32xf32>
    %106 = arith.addf %101, %105 : vector<8x32xf32>
    %c0_46 = arith.constant 0 : index
    %c0_47 = arith.constant 0 : index
    %107 = vector.load %arg14[%c0_46, %c0_47] : memref<8x32xf32, #tpu.memory_space<vmem>>, vector<8x32xf32>
    tpu.vector_store %arg14[%c0_46, %c0_47], %106 {strides = array<i32>} : memref<8x32xf32, #tpu.memory_space<vmem>>, vector<8x32xf32>,
    %c0_i32_48 = arith.constant 0 : i32
    %108 = arith.cmpi eq, %arg2, %c0_i32_48 : i32
    %109 = arith.extui %108 : i1 to i32
    %c0_i32_49 = arith.constant 0 : i32
    %110 = arith.cmpi ne, %109, %c0_i32_49 : i32
    scf.if %110 {
      %c0_50 = arith.constant 0 : index
      %c0_51 = arith.constant 0 : index
      %111 = vector.load %arg14[%c0_50, %c0_51] : memref<8x32xf32, #tpu.memory_space<vmem>>, vector<8x32xf32>
      %c0_52 = arith.constant 0 : index
      %c0_53 = arith.constant 0 : index
      %112 = vector.load %arg9[%c0_52, %c0_53] : memref<1x32xf32, #tpu.memory_space<vmem>>, vector<1x32xf32>
      %113 = vector.broadcast %112 : vector<1x32xf32> to vector<8x32xf32>
      %114 = arith.addf %111, %113 : vector<8x32xf32>
      %c0_54 = arith.constant 0 : index
      %c0_55 = arith.constant 0 : index
      %c0_56 = arith.constant 0 : index
      %115 = vector.load %arg10[%c0_54, %c0_55, %c0_56] : memref<1x8x32xf32, #tpu.memory_space<vmem>>, vector<1x8x32xf32>
      %116 = vector.shape_cast %115 : vector<1x8x32xf32> to vector<8x32xf32>
      %117 = vector.shape_cast %114 : vector<8x32xf32> to vector<1x8x32xf32>
      tpu.vector_store %arg10[%c0_54, %c0_55, %c0_56], %117 {strides = array<i32>} : memref<1x8x32xf32, #tpu.memory_space<vmem>>, vector<1x8x32xf32>,
    } else {
    }
    return
  }
  func.func @transform_0(%arg0: i32, %arg1: i32, %arg2: i32) -> (i32, i32, i32) {
    %c0_i32 = arith.constant 0 : i32
    %c0_i32_0 = arith.constant 0 : i32
    %c0_i32_1 = arith.constant 0 : i32
    return %arg0, %c0_i32, %c0_i32_0 : i32, i32, i32
  }
  func.func @transform_1(%arg0: i32, %arg1: i32, %arg2: i32) -> (i32, i32, i32) {
    %c0_i32 = arith.constant 0 : i32
    %c0_i32_0 = arith.constant 0 : i32
    %c0_i32_1 = arith.constant 0 : i32
    %c0_i32_2 = arith.constant 0 : i32
    return %c0_i32, %c0_i32_0, %c0_i32_1 : i32, i32, i32
  }
  func.func @transform_2(%arg0: i32, %arg1: i32, %arg2: i32) -> (i32, i32, i32) {
    %c0_i32 = arith.constant 0 : i32
    %c0_i32_0 = arith.constant 0 : i32
    %c0_i32_1 = arith.constant 0 : i32
    %c0_i32_2 = arith.constant 0 : i32
    return %c0_i32, %c0_i32_0, %c0_i32_1 : i32, i32, i32
  }
  func.func @transform_3(%arg0: i32, %arg1: i32, %arg2: i32) -> (i32, i32, i32) {
    %c0_i32 = arith.constant 0 : i32
    %c0_i32_0 = arith.constant 0 : i32
    %c0_i32_1 = arith.constant 0 : i32
    %c0_i32_2 = arith.constant 0 : i32
    return %c0_i32, %c0_i32_0, %c0_i32_1 : i32, i32, i32
  }
  func.func @transform_4(%arg0: i32, %arg1: i32, %arg2: i32) -> (i32, i32, i32) {
    %c0_i32 = arith.constant 0 : i32
    %c0_i32_0 = arith.constant 0 : i32
    %c0_i32_1 = arith.constant 0 : i32
    %c0_i32_2 = arith.constant 0 : i32
    return %c0_i32, %c0_i32_0, %c0_i32_1 : i32, i32, i32
  }
  func.func @transform_5(%arg0: i32, %arg1: i32, %arg2: i32) -> (i32, i32, i32) {
    %c0_i32 = arith.constant 0 : i32
    %c0_i32_0 = arith.constant 0 : i32
    %c0_i32_1 = arith.constant 0 : i32
    %c0_i32_2 = arith.constant 0 : i32
    return %c0_i32, %c0_i32_0, %c0_i32_1 : i32, i32, i32
  }
  func.func @transform_6(%arg0: i32, %arg1: i32, %arg2: i32) -> (i32, i32) {
    %c0_i32 = arith.constant 0 : i32
    %c0_i32_0 = arith.constant 0 : i32
    %c0_i32_1 = arith.constant 0 : i32
    return %c0_i32, %c0_i32_0 : i32, i32
  }
  func.func @transform_7(%arg0: i32, %arg1: i32, %arg2: i32) -> (i32, i32, i32) {
    %c0_i32 = arith.constant 0 : i32
    %c0_i32_0 = arith.constant 0 : i32
    return %arg0, %arg1, %c0_i32 : i32, i32, i32
  }
  func.func @transform_8(%arg0: i32, %arg1: i32, %arg2: i32) -> (i32, i32, i32, i32) {
    %c0_i32 = arith.constant 0 : i32
    %c0_i32_0 = arith.constant 0 : i32
    return %arg0, %arg2, %arg1, %c0_i32 : i32, i32, i32, i32
  }
}

</mosaic_0001>

<llo_original>
// kernel: tpu_custom_call.1
$region0: #{tpu_custom_call.1}
  #allocation0 [shape = 'u32[]', space=smem, size = 0x4, offset = 0x4, fixed_abs, tag = 'smem constant byte address 0x4 - core index']
  #allocation1 [shape = 'u32[72,128]{1,0:T(1,128)}', space=vmem, size = 0x9000, scoped, tag = 'internal scratch']
  #allocation2 [shape = 'f32[1,8,64]{2,1,0:T(8,128)}', space=vmem, size = 0x1000, scoped, tag = 'scratch operand']
  #allocation3 [shape = 'f32[8,8]{1,0:T(8,128)}', space=vmem, size = 0x1000, scoped, tag = 'scratch operand']
  #allocation4 [shape = 'f32[8,32]{1,0:T(8,128)}', space=vmem, size = 0x1000, scoped, tag = 'scratch operand']
  %s0 = inlined_call_operand.hbm [shape: f32[2,8,32], index: 0, kind: input, shape index: {}]
  %s1 = inlined_call_operand.hbm [shape: f32[1,32,32], index: 1, kind: input, shape index: {}]
  %s2 = inlined_call_operand.vmem [shape: f32[1,1,32], index: 2, kind: input, shape index: {}]
  %s3 = inlined_call_operand.hbm [shape: f32[1,32,64], index: 3, kind: input, shape index: {}]
  %s4 = inlined_call_operand.vmem [shape: f32[1,1,64], index: 4, kind: input, shape index: {}]
  %s5 = inlined_call_operand.hbm [shape: f32[1,32,32], index: 5, kind: input, shape index: {}]
  %s6 = inlined_call_operand.vmem [shape: f32[1,32], index: 6, kind: input, shape index: {}]
  %s7 = inlined_call_operand.hbm [shape: f32[2,8,32], index: 7, kind: output, shape index: {0}]
  %s8 = inlined_call_operand.hbm [shape: f32[2,4,8,8], index: 8, kind: output, shape index: {1}]
  %9 = xla_tuple %s7, %s8
  %s10 = sld [smem:[#allocation0]]
  $region97: #{tpu_custom_call.1} parent=0
    _
  %s12 = ssub.s32 1, %s10
  %s13 = scalar_select 0, %s12, %s10
  $region1: #{tpu_custom_call.1} parent=0
    #allocation5 [shape = 'u8[8192]{0}', space=vmem, size = 0x2000, scoped, tag = 'input window, operand 0']
    #allocation6 [shape = 's32[2]{0}', space=sflag, size = 0x8, scoped, tag = 'scoped memory for tpu_custom_call.1']
    #allocation7 [shape = 's32[2]{0}', space=sflag, size = 0x8, scoped, tag = 'scoped memory for tpu_custom_call.1']
    #allocation8 [shape = 'u8[16384]{0}', space=vmem, size = 0x4000, scoped, tag = 'input window, operand 1, single buffered']
    #allocation9 [shape = 's32[1]{0}', space=sflag, size = 0x4, scoped, tag = 'scoped memory for tpu_custom_call.1']
    #allocation10 [shape = 'u8[16384]{0}', space=vmem, size = 0x4000, scoped, tag = 'input window, operand 3, single buffered']
    #allocation11 [shape = 'u8[16384]{0}', space=vmem, size = 0x4000, scoped, tag = 'input window, operand 5, single buffered']
    #allocation12 [shape = 's32[1]{0}', space=sflag, size = 0x4, scoped, tag = 'scoped memory for tpu_custom_call.1']
    #allocation13 [shape = 'u8[8192]{0}', space=vmem, size = 0x2000, scoped, tag = 'output window, operand 0']
    #allocation14 [shape = 'u8[32768]{0}', space=vmem, size = 0x8000, scoped, tag = 'output window, operand 1']
    #allocation15 [shape = 's32[2]{0}', space=sflag, size = 0x8, scoped, tag = 'scoped memory for tpu_custom_call.1']
    %14 = vsyncpa [#allocation6], 0
    %s15 = scalar_lea.sflag [#allocation6], 1
    %16 = vsyncpa %s15, 0
    %17 = vsyncpa [#allocation9], 0
    %18 = vsyncpa [#allocation12], 0
    %19 = vsyncpa [#allocation7], 0
    %s20 = scalar_lea.sflag [#allocation7], 1
    %21 = vsyncpa %s20, 0
    %22 = vsyncpa [#allocation15], 0
    %s23 = scalar_lea.sflag [#allocation15], 1
    %24 = vsyncpa %s23, 0
    loop: start=0, step=1, limit=4
    $region2: #{tpu_custom_call.1} parent=1 // loop_pre_header
      _
    $region3: #{tpu_custom_call.1} parent=1 // loop_header
      %s26 = sphi 0, %s30
      %p27 = scmp.ge.s32.totalorder %s26, 4
      %s33 = sphi 0, %s52
      %s34 = sphi 0, %s48
      %s35 = sphi 0, %s44
      %s36 = sphi 0, %s33
      %s37 = sphi 0, %s34
      %s38 = sphi 0, %s35
      %s39 = sphi 0, %s36
      %s40 = sphi 0, %s37
      %s41 = sphi 0, %s38
      %s55 = sphi 0, %s57
      %s58 = sphi 0, %s55
      %s59 = sphi 0, %s58
      %s75 = sphi 0, %s59
      %s79 = sphi 0, %s79
      %s81 = sphi 0, %s79
      %s82 = sphi 0, %s81
      %s96 = sphi 0, %s82
      %s100 = sphi 0, %s100
      %s102 = sphi 0, %s100
      %s103 = sphi 0, %s102
      %s117 = sphi 0, %s103
      %s121 = sphi 0, %s121
      %s123 = sphi 0, %s121
      %s124 = sphi 0, %s123
      %s138 = sphi 0, %s124
      %s142 = sphi 0, %s142
      %s144 = sphi 0, %s142
      %s145 = sphi 0, %s144
      %s159 = sphi 0, %s145
      %s163 = sphi 0, %s163
      %s165 = sphi 0, %s163
      %s166 = sphi 0, %s165
      %s180 = sphi 0, %s166
      %s184 = sphi 0, %s184
      %s186 = sphi 0, %s184
      %s187 = sphi 0, %s186
      %s201 = sphi 0, %s187
      %s209 = sphi 0, %s211
      %s212 = sphi 0, %s209
      %s213 = sphi 0, %s212
      %s229 = sphi 0, %s213
      %s239 = sphi 0, %s241
      %s242 = sphi 0, %s239
      %s243 = sphi 0, %s242
      %s259 = sphi 0, %s243
    $region4: #{tpu_custom_call.1} parent=1 // loop_header_branch
      %29 = sbr.rel (%p27) target = $region8
    $region5: #{tpu_custom_call.1} parent=1 // loop_body
      %s31 = ssub.s32 %s26, 1
      %s32 = ssub.s32 %s26, 2
      %s42 = sadd.s32 1, %s35
      %p43 = scmp.ge.s32.totalorder %s42, 1
      %s44 = scalar_select %p43, 0, %s42
      %s45 = sadd.s32 1, %s34
      %s46 = scalar_select %p43, %s45, %s34
      %p47 = scmp.ge.s32.totalorder %s46, 1
      %s48 = scalar_select %p47, 0, %s46
      %s49 = sadd.s32 1, %s33
      %s50 = scalar_select %p47, %s49, %s33
      %p51 = scmp.ge.s32.totalorder %s50, 2
      %s52 = scalar_select %p51, 0, %s50
      %s53 = ssub.s32 %s33, %s52
      %p54 = scmp.eq.s32.totalorder %s53, 0
      %s56 = sadd.s32 %s55, 1
      %s57 = scalar_select %p54, %s55, %s56
      %p60 = pneg %p54
      %p61 = scmp.eq.s32.totalorder %s26, 1
      %p62 = por %p60, %p61
      %p63 = scmp.ne.s32.totalorder %s55, %s58
      %p64 = scmp.eq.s32.totalorder %s26, 0
      %p65 = por %p63, %p64
      %p66 = scmp.ne.s32.totalorder %s55, %s58
      %p67 = scmp.eq.s32.totalorder %s31, 1
      %p68 = por %p66, %p67
      %p69 = scmp.ne.s32.totalorder %s58, %s59
      %p70 = scmp.eq.s32.totalorder %s31, 0
      %p71 = por %p69, %p70
      %p72 = scmp.ne.s32.totalorder %s58, %s59
      %p73 = scmp.eq.s32.totalorder %s32, 1
      %p74 = por %p72, %p73
      %p76 = scmp.ne.s32.totalorder %s59, %s75
      %p77 = scmp.eq.s32.totalorder %s32, 0
      %p78 = por %p76, %p77
      %s80 = sadd.s32 %s79, 1
      %p83 = scmp.eq.s32.totalorder %s26, 1
      %p84 = scmp.ne.s32.totalorder %s79, %s81
      %p85 = scmp.eq.s32.totalorder %s26, 0
      %p86 = por %p84, %p85
      %p87 = scmp.ne.s32.totalorder %s79, %s81
      %p88 = scmp.eq.s32.totalorder %s31, 1
      %p89 = por %p87, %p88
      %p90 = scmp.ne.s32.totalorder %s81, %s82
      %p91 = scmp.eq.s32.totalorder %s31, 0
      %p92 = por %p90, %p91
      %p93 = scmp.ne.s32.totalorder %s81, %s82
      %p94 = scmp.eq.s32.totalorder %s32, 1
      %p95 = por %p93, %p94
      %p97 = scmp.ne.s32.totalorder %s82, %s96
      %p98 = scmp.eq.s32.totalorder %s32, 0
      %p99 = por %p97, %p98
      %s101 = sadd.s32 %s100, 1
      %p104 = scmp.eq.s32.totalorder %s26, 1
      %p105 = scmp.ne.s32.totalorder %s100, %s102
      %p106 = scmp.eq.s32.totalorder %s26, 0
      %p107 = por %p105, %p106
      %p108 = scmp.ne.s32.totalorder %s100, %s102
      %p109 = scmp.eq.s32.totalorder %s31, 1
      %p110 = por %p108, %p109
      %p111 = scmp.ne.s32.totalorder %s102, %s103
      %p112 = scmp.eq.s32.totalorder %s31, 0
      %p113 = por %p111, %p112
      %p114 = scmp.ne.s32.totalorder %s102, %s103
      %p115 = scmp.eq.s32.totalorder %s32, 1
      %p116 = por %p114, %p115
      %p118 = scmp.ne.s32.totalorder %s103, %s117
      %p119 = scmp.eq.s32.totalorder %s32, 0
      %p120 = por %p118, %p119
      %s122 = sadd.s32 %s121, 1
      %p125 = scmp.eq.s32.totalorder %s26, 1
      %p126 = scmp.ne.s32.totalorder %s121, %s123
      %p127 = scmp.eq.s32.totalorder %s26, 0
      %p128 = por %p126, %p127
      %p129 = scmp.ne.s32.totalorder %s121, %s123
      %p130 = scmp.eq.s32.totalorder %s31, 1
      %p131 = por %p129, %p130
      %p132 = scmp.ne.s32.totalorder %s123, %s124
      %p133 = scmp.eq.s32.totalorder %s31, 0
      %p134 = por %p132, %p133
      %p135 = scmp.ne.s32.totalorder %s123, %s124
      %p136 = scmp.eq.s32.totalorder %s32, 1
      %p137 = por %p135, %p136
      %p139 = scmp.ne.s32.totalorder %s124, %s138
      %p140 = scmp.eq.s32.totalorder %s32, 0
      %p141 = por %p139, %p140
      %s143 = sadd.s32 %s142, 1
      %p146 = scmp.eq.s32.totalorder %s26, 1
      %p147 = scmp.ne.s32.totalorder %s142, %s144
      %p148 = scmp.eq.s32.totalorder %s26, 0
      %p149 = por %p147, %p148
      %p150 = scmp.ne.s32.totalorder %s142, %s144
      %p151 = scmp.eq.s32.totalorder %s31, 1
      %p152 = por %p150, %p151
      %p153 = scmp.ne.s32.totalorder %s144, %s145
      %p154 = scmp.eq.s32.totalorder %s31, 0
      %p155 = por %p153, %p154
      %p156 = scmp.ne.s32.totalorder %s144, %s145
      %p157 = scmp.eq.s32.totalorder %s32, 1
      %p158 = por %p156, %p157
      %p160 = scmp.ne.s32.totalorder %s145, %s159
      %p161 = scmp.eq.s32.totalorder %s32, 0
      %p162 = por %p160, %p161
      %s164 = sadd.s32 %s163, 1
      %p167 = scmp.eq.s32.totalorder %s26, 1
      %p168 = scmp.ne.s32.totalorder %s163, %s165
      %p169 = scmp.eq.s32.totalorder %s26, 0
      %p170 = por %p168, %p169
      %p171 = scmp.ne.s32.totalorder %s163, %s165
      %p172 = scmp.eq.s32.totalorder %s31, 1
      %p173 = por %p171, %p172
      %p174 = scmp.ne.s32.totalorder %s165, %s166
      %p175 = scmp.eq.s32.totalorder %s31, 0
      %p176 = por %p174, %p175
      %p177 = scmp.ne.s32.totalorder %s165, %s166
      %p178 = scmp.eq.s32.totalorder %s32, 1
      %p179 = por %p177, %p178
      %p181 = scmp.ne.s32.totalorder %s166, %s180
      %p182 = scmp.eq.s32.totalorder %s32, 0
      %p183 = por %p181, %p182
      %s185 = sadd.s32 %s184, 1
      %p188 = scmp.eq.s32.totalorder %s26, 1
      %p189 = scmp.ne.s32.totalorder %s184, %s186
      %p190 = scmp.eq.s32.totalorder %s26, 0
      %p191 = por %p189, %p190
      %p192 = scmp.ne.s32.totalorder %s184, %s186
      %p193 = scmp.eq.s32.totalorder %s31, 1
      %p194 = por %p192, %p193
      %p195 = scmp.ne.s32.totalorder %s186, %s187
      %p196 = scmp.eq.s32.totalorder %s31, 0
      %p197 = por %p195, %p196
      %p198 = scmp.ne.s32.totalorder %s186, %s187
      %p199 = scmp.eq.s32.totalorder %s32, 1
      %p200 = por %p198, %p199
      %p202 = scmp.ne.s32.totalorder %s187, %s201
      %p203 = scmp.eq.s32.totalorder %s32, 0
      %p204 = por %p202, %p203
      %s205 = ssub.s32 %s33, %s52
      %s206 = ssub.s32 %s34, %s48
      %s207 = sor.u32 %s205, %s206
      %p208 = scmp.eq.s32.totalorder %s207, 0
      %s210 = sadd.s32 %s209, 1
      %s211 = scalar_select %p208, %s209, %s210
      %p214 = pneg %p208
      %p215 = scmp.eq.s32.totalorder %s26, 1
      %p216 = por %p214, %p215
      %p217 = scmp.ne.s32.totalorder %s209, %s212
      %p218 = scmp.eq.s32.totalorder %s26, 0
      %p219 = por %p217, %p218
      %p220 = scmp.ne.s32.totalorder %s209, %s212
      %p221 = scmp.eq.s32.totalorder %s31, 1
      %p222 = por %p220, %p221
      %p223 = scmp.ne.s32.totalorder %s212, %s213
      %p224 = scmp.eq.s32.totalorder %s31, 0
      %p225 = por %p223, %p224
      %p226 = scmp.ne.s32.totalorder %s212, %s213
      %p227 = scmp.eq.s32.totalorder %s32, 1
      %p228 = por %p226, %p227
      %p230 = scmp.ne.s32.totalorder %s213, %s229
      %p231 = scmp.eq.s32.totalorder %s32, 0
      %p232 = por %p230, %p231
      %s233 = ssub.s32 %s33, %s52
      %s234 = ssub.s32 %s35, %s44
      %s235 = sor.u32 %s233, %s234
      %s236 = ssub.s32 %s34, %s48
      %s237 = sor.u32 %s235, %s236
      %p238 = scmp.eq.s32.totalorder %s237, 0
      %s240 = sadd.s32 %s239, 1
      %s241 = scalar_select %p238, %s239, %s240
      %p244 = pneg %p238
      %p245 = scmp.eq.s32.totalorder %s26, 1
      %p246 = por %p244, %p245
      %p247 = scmp.ne.s32.totalorder %s239, %s242
      %p248 = scmp.eq.s32.totalorder %s26, 0
      %p249 = por %p247, %p248
      %p250 = scmp.ne.s32.totalorder %s239, %s242
      %p251 = scmp.eq.s32.totalorder %s31, 1
      %p252 = por %p250, %p251
      %p253 = scmp.ne.s32.totalorder %s242, %s243
      %p254 = scmp.eq.s32.totalorder %s31, 0
      %p255 = por %p253, %p254
      %p256 = scmp.ne.s32.totalorder %s242, %s243
      %p257 = scmp.eq.s32.totalorder %s32, 1
      %p258 = por %p256, %p257
      %p260 = scmp.ne.s32.totalorder %s243, %s259
      %p261 = scmp.eq.s32.totalorder %s32, 0
      %p262 = por %p260, %p261
      %p263 = scmp.le.s32.totalorder 1, %s26
      %p264 = scmp.lt.s32.totalorder %s26, 3
      %p265 = pnand %p263, %p264
      %p266 = pneg %p265
      // Predicated region
      $region9: #{tpu_custom_call.1} parent=5 // pred_check
        _
      $region10: #{tpu_custom_call.1} parent=5 // pred_check_branch
        %268 = sbr.rel (%p265) target = $region12
      $region11: #{tpu_custom_call.1} parent=5 // pred_region
        %s269 = ssub.s32 %s26, 1
        // Predicated region
        $region13: #{tpu_custom_call.1} parent=11 // pred_check
          %p270 = pneg %p92
        $region14: #{tpu_custom_call.1} parent=11 // pred_check_branch
          %272 = sbr.rel (%p270) target = $region16
        $region15: #{tpu_custom_call.1} parent=11 // pred_region
          %274 = vsyncadd [#allocation9], 0
          %s275 = sshll.u32 %s1, 4
          %s276 = int_to_ptr.hbm [resolvable:$true] %s275
          %s277 = sshll.u32 [#allocation8], 4
          %s278 = int_to_ptr.vmem [resolvable:$true] %s277
          %283 = dma.hbm_to_vmem [thread:$0]  %s276, 512, %s278, [#allocation9], 128, 128, 8
        $region16: #{tpu_custom_call.1} parent=11 // pred_fallthru
          _
        // Predicated region
        $region17: #{tpu_custom_call.1} parent=11 // pred_check
          %p284 = pneg %p113
        $region18: #{tpu_custom_call.1} parent=11 // pred_check_branch
          %286 = sbr.rel (%p284) target = $region20
        $region19: #{tpu_custom_call.1} parent=11 // pred_region
          _
        $region20: #{tpu_custom_call.1} parent=11 // pred_fallthru
          _
        // Predicated region
        $region21: #{tpu_custom_call.1} parent=11 // pred_check
          %p287 = pneg %p134
        $region22: #{tpu_custom_call.1} parent=11 // pred_check_branch
          %289 = sbr.rel (%p287) target = $region24
        $region23: #{tpu_custom_call.1} parent=11 // pred_region
          %291 = vsyncadd [#allocation9], 0
          %s292 = sshll.u32 %s3, 4
          %s293 = int_to_ptr.hbm [resolvable:$true] %s292
          %s294 = sshll.u32 [#allocation10], 4
          %s295 = int_to_ptr.vmem [resolvable:$true] %s294
          %300 = dma.hbm_to_vmem [thread:$0]  %s293, 512, %s295, [#allocation9], 128, 128, 8
        $region24: #{tpu_custom_call.1} parent=11 // pred_fallthru
          _
        // Predicated region
        $region25: #{tpu_custom_call.1} parent=11 // pred_check
          %p301 = pneg %p155
        $region26: #{tpu_custom_call.1} parent=11 // pred_check_branch
          %303 = sbr.rel (%p301) target = $region28
        $region27: #{tpu_custom_call.1} parent=11 // pred_region
          _
        $region28: #{tpu_custom_call.1} parent=11 // pred_fallthru
          _
        // Predicated region
        $region29: #{tpu_custom_call.1} parent=11 // pred_check
          %p304 = pneg %p176
        $region30: #{tpu_custom_call.1} parent=11 // pred_check_branch
          %306 = sbr.rel (%p304) target = $region32
        $region31: #{tpu_custom_call.1} parent=11 // pred_region
          %308 = vsyncadd [#allocation12], 0
          %s309 = sshll.u32 %s5, 4
          %s310 = int_to_ptr.hbm [resolvable:$true] %s309
          %s311 = sshll.u32 [#allocation11], 4
          %s312 = int_to_ptr.vmem [resolvable:$true] %s311
          %317 = dma.hbm_to_vmem [thread:$0]  %s310, 512, %s312, [#allocation12], 128, 128, 8
        $region32: #{tpu_custom_call.1} parent=11 // pred_fallthru
          _
        // Predicated region
        $region33: #{tpu_custom_call.1} parent=11 // pred_check
          %p318 = pneg %p197
        $region34: #{tpu_custom_call.1} parent=11 // pred_check_branch
          %320 = sbr.rel (%p318) target = $region36
        $region35: #{tpu_custom_call.1} parent=11 // pred_region
          _
        $region36: #{tpu_custom_call.1} parent=11 // pred_fallthru
          _
      $region12: #{tpu_custom_call.1} parent=5 // pred_fallthru
        _
      %p321 = scmp.lt.s32.totalorder %s26, 2
      // Predicated region
      $region37: #{tpu_custom_call.1} parent=5 // pred_check
        %p322 = pneg %p321
      $region38: #{tpu_custom_call.1} parent=5 // pred_check_branch
        %324 = sbr.rel (%p322) target = $region40
      $region39: #{tpu_custom_call.1} parent=5 // pred_region
        // Predicated region
        $region41: #{tpu_custom_call.1} parent=39 // pred_check
          %p325 = pneg %p65
        $region42: #{tpu_custom_call.1} parent=39 // pred_check_branch
          %327 = sbr.rel (%p325) target = $region44
        $region43: #{tpu_custom_call.1} parent=39 // pred_region
          %s328 = sand.u32 %s55, 1
          %s329 = scalar_lea.sflag [#allocation6], %s328
          %s330 = sand.u32 %s55, 1
          %s331 = smul.addr %s330, 8
          %s332 = scalar_lea.vmem [#allocation5], %s331
          %334 = vsyncadd %s329, 0
          %s335 = smul.addr %s33, 8
          %s336 = scalar_lea.hbm %s0, %s335
          %s338 = sshll.u32 %s336, 4
          %s339 = int_to_ptr.hbm [resolvable:$true] %s338
          %s340 = sshll.u32 %s332, 4
          %s341 = int_to_ptr.vmem [resolvable:$true] %s340
          %343 = dma.hbm_to_vmem [thread:$0]  %s339, 128, %s341, %s329
        $region44: #{tpu_custom_call.1} parent=39 // pred_fallthru
          _
      $region40: #{tpu_custom_call.1} parent=5 // pred_fallthru
        _
      %p344 = scmp.le.s32.totalorder 1, %s26
      %p345 = scmp.lt.s32.totalorder %s26, 3
      %p346 = pnand %p344, %p345
      %p347 = pneg %p346
      // Predicated region
      $region45: #{tpu_custom_call.1} parent=5 // pred_check
        _
      $region46: #{tpu_custom_call.1} parent=5 // pred_check_branch
        %349 = sbr.rel (%p346) target = $region48
      $region47: #{tpu_custom_call.1} parent=5 // pred_region
        %s350 = ssub.s32 %s26, 1
        %s351 = sand.u32 %s58, 1
        %s352 = scalar_lea.sflag [#allocation6], %s351
        %s353 = sand.u32 %s58, 1
        %s354 = smul.addr %s353, 8
        %s355 = scalar_lea.vmem [#allocation5], %s354
        // Predicated region
        $region49: #{tpu_custom_call.1} parent=47 // pred_check
          %p356 = pneg %p71
        $region50: #{tpu_custom_call.1} parent=47 // pred_check_branch
          %358 = sbr.rel (%p356) target = $region52
        $region51: #{tpu_custom_call.1} parent=47 // pred_region
          %360 = dma.done %s352, 128
        $region52: #{tpu_custom_call.1} parent=47 // pred_fallthru
          _
        // Predicated region
        $region53: #{tpu_custom_call.1} parent=47 // pred_check
          %p361 = pneg %p92
        $region54: #{tpu_custom_call.1} parent=47 // pred_check_branch
          %363 = sbr.rel (%p361) target = $region56
        $region55: #{tpu_custom_call.1} parent=47 // pred_region
          %365 = dma.done [#allocation9], 512
        $region56: #{tpu_custom_call.1} parent=47 // pred_fallthru
          _
        // Predicated region
        $region57: #{tpu_custom_call.1} parent=47 // pred_check
          %p366 = pneg %p134
        $region58: #{tpu_custom_call.1} parent=47 // pred_check_branch
          %368 = sbr.rel (%p366) target = $region60
        $region59: #{tpu_custom_call.1} parent=47 // pred_region
          %370 = dma.done [#allocation9], 512
        $region60: #{tpu_custom_call.1} parent=47 // pred_fallthru
          _
        // Predicated region
        $region61: #{tpu_custom_call.1} parent=47 // pred_check
          %p371 = pneg %p176
        $region62: #{tpu_custom_call.1} parent=47 // pred_check_branch
          %373 = sbr.rel (%p371) target = $region64
        $region63: #{tpu_custom_call.1} parent=47 // pred_region
          %375 = dma.done [#allocation12], 512
        $region64: #{tpu_custom_call.1} parent=47 // pred_fallthru
          _
        %s376 = sand.u32 %s58, 1
        %s377 = scalar_lea.sflag [#allocation6], %s376
        %s378 = sand.u32 %s58, 1
        %s379 = smul.addr %s378, 8
        %s380 = scalar_lea.vmem [#allocation5], %s379
        %p381 = pneg %p71
        %p382 = pneg %p68
        %p383 = pneg %p92
        %p384 = pneg %p89
        %p385 = pneg %p113
        %p386 = pneg %p110
        %p387 = pneg %p134
        %p388 = pneg %p131
        %p389 = pneg %p155
        %p390 = pneg %p152
        %p391 = pneg %p176
        %p392 = pneg %p173
        %p393 = pneg %p197
        %p394 = pneg %p194
        %p395 = pneg %p225
        %p396 = pneg %p222
        %s397 = sand.u32 %s212, 1
        %s398 = scalar_lea.sflag [#allocation7], %s397
        %s399 = sand.u32 %s212, 1
        %s400 = smul.addr %s399, 8
        %s401 = scalar_lea.vmem [#allocation13], %s400
        %p402 = pneg %p255
        %p403 = pneg %p252
        %s404 = sand.u32 %s242, 1
        %s405 = scalar_lea.sflag [#allocation15], %s404
        %s406 = sand.u32 %s242, 1
        %s407 = smul.addr %s406, 32
        %s408 = scalar_lea.vmem [#allocation14], %s407
        %s409 = smul.u32 4, %s38
        %p410 = scmp.eq.s32.totalorder %s37, 0
        // Predicated region
        $region65: #{tpu_custom_call.1} parent=47 // pred_check
          %p411 = pneg %p410
        $region66: #{tpu_custom_call.1} parent=47 // pred_check_branch
          %413 = sbr.rel (%p411) target = $region68
        $region67: #{tpu_custom_call.1} parent=47 // pred_region
          %v414 = vld [vmem:[%s355] sm:$0xff]
          %s415 = smul.u32 %s38, 32
          %s416 = scalar_lea.vmem [#allocation10], %s415
          %v417 = vld [vmem:[%s416] sm:$0xff]
          %v418 = vld [vmem:[%s416 + $0x8] sm:$0xff]
          %v419 = vld [vmem:[%s416 + $0x10] sm:$0xff]
          %v420 = vld [vmem:[%s416 + $0x18] sm:$0xff]
          %s421 = scalar_lea.vmem %s4, %s38
          %v422 = vld [vmem:[%s421] sm:$0x1]
          %v424 = vperm.slane %v422, 0
          %vm426 = vcmask 261120
          %v428 = vsel %vm426, %v414, 0
          %430 = vmatpush.msra.mxu0 0.0
          %431 = vmatpush.msra.mxu0 0.0
          %432 = vmatpush.msra.mxu0 0.0
          %433 = vmatpush.msra.mxu0 0.0
          %434 = vmatpush.msra.mxu0 0.0
          %435 = vmatpush.msra.mxu0 0.0
          %436 = vmatpush.msra.mxu0 0.0
          %437 = vmatpush.msra.mxu0 0.0
          %438 = vmatpush.msra.mxu0 0.0
          %439 = vmatpush.msra.mxu0 0.0
          %440 = vmatpush.msra.mxu0 0.0
          %441 = vmatpush.msra.mxu0 0.0
          %442 = vmatpush.msra.mxu0 %v420
          %443 = vmatpush.msra.mxu0 %v419
          %444 = vmatpush.msra.mxu0 %v418
          %445 = vmatpush.msra.mxu0 %v417
          %446 = vmatmul.f32.gmra.mxu0 %v428
          %v447 = vpop.f32.mrf.mxu0
          %v448 = vadd.f32 %v424, %v447
          %449 = vdwg.mxu0
          %s450 = smul.u32 %s38, 8
          %s451 = scalar_lea.vmem [#allocation2], %s450
          %vm452 = vcmask 523264
          %453 = vst.msk [vmem:[%s451] sm:$0xff] %vm452, %v448
        $region68: #{tpu_custom_call.1} parent=47 // pred_fallthru
          _
        %p454 = scmp.eq.s32.totalorder %s38, 0
        // Predicated region
        $region69: #{tpu_custom_call.1} parent=47 // pred_check
          %p455 = pneg %p454
        $region70: #{tpu_custom_call.1} parent=47 // pred_check_branch
          %457 = sbr.rel (%p455) target = $region72
        $region71: #{tpu_custom_call.1} parent=47 // pred_region
          %s458 = smul.u32 %s37, 8
          %v459 = vlaneseq
          %v460 = vshrl.u32 %v459, 7
          %v461 = vstv %s458
          %v462 = vadd.s32 %v461, %v460
          %v463 = vlaneseq
          %v464 = vand.u32 %v463, 127
          %vm465 = vcmp.le.s32.totalorder %v464, %v462
          %v466 = vsel %vm465, 0.0, -2.3819763e+38
          %vm467 = vcmask 64512
          %468 = vst.msk [vmem:[#allocation3] sm:$0xff] %vm467, %v466
          %vm469 = vcmask 261120
          %470 = vst.msk [vmem:[#allocation4] sm:$0xff] %vm469, 0.0
        $region72: #{tpu_custom_call.1} parent=47 // pred_fallthru
          _
        %s471 = smul.u32 %s37, 8
        %s472 = scalar_lea.vmem %s355, %s471 [#allocation5]
        %v473 = vld [vmem:[%s472] sm:$0xff]
        %s474 = smul.u32 %s38, 32
        %s475 = scalar_lea.vmem [#allocation8], %s474
        %v476 = vld [vmem:[%s475] sm:$0xff]
        %v477 = vld [vmem:[%s475 + $0x8] sm:$0xff]
        %v478 = vld [vmem:[%s475 + $0x10] sm:$0xff]
        %v479 = vld [vmem:[%s475 + $0x18] sm:$0xff]
        %s480 = scalar_lea.vmem %s2, %s38
        %v481 = vld [vmem:[%s480] sm:$0x1]
        %v483 = vperm.slane %v481, 0
        %vm485 = vcmask 261120
        %v487 = vsel %vm485, %v473, 0
        %489 = vmatpush.msra.mxu0 0.0
        %490 = vmatpush.msra.mxu0 0.0
        %491 = vmatpush.msra.mxu0 0.0
        %492 = vmatpush.msra.mxu0 0.0
        %493 = vmatpush.msra.mxu0 0.0
        %494 = vmatpush.msra.mxu0 0.0
        %495 = vmatpush.msra.mxu0 0.0
        %496 = vmatpush.msra.mxu0 0.0
        %497 = vmatpush.msra.mxu0 0.0
        %498 = vmatpush.msra.mxu0 0.0
        %499 = vmatpush.msra.mxu0 0.0
        %500 = vmatpush.msra.mxu0 0.0
        %501 = vmatpush.msra.mxu0 %v479
        %502 = vmatpush.msra.mxu0 %v478
        %503 = vmatpush.msra.mxu0 %v477
        %504 = vmatpush.msra.mxu0 %v476
        %505 = vmatmul.f32.gmra.mxu0 %v487
        %v506 = vpop.f32.mrf.mxu0
        %v507 = vadd.f32 %v483, %v506
        %508 = vdwg.mxu0
        %s509 = smul.u32 %s38, 8
        %s510 = scalar_lea.vmem [#allocation2], %s509
        %v511 = vld [vmem:[%s510] sm:$0xff]
        %v512 = vld [vmem:[#allocation3] sm:$0xff]
        %vm513 = vcmask 64512
        %v515 = vsel %vm513, %v507, 0
        %v518 = vsel %vm513, %v511, 0
        %520 = vmatpush.xpose.msra.mxu0 0.0
        %521 = vmatpush.xpose.msra.mxu0 0.0
        %522 = vmatpush.xpose.msra.mxu0 0.0
        %523 = vmatpush.xpose.msra.mxu0 0.0
        %524 = vmatpush.xpose.msra.mxu0 0.0
        %525 = vmatpush.xpose.msra.mxu0 0.0
        %526 = vmatpush.xpose.msra.mxu0 0.0
        %527 = vmatpush.xpose.msra.mxu0 0.0
        %528 = vmatpush.xpose.msra.mxu0 0.0
        %529 = vmatpush.xpose.msra.mxu0 0.0
        %530 = vmatpush.xpose.msra.mxu0 0.0
        %531 = vmatpush.xpose.msra.mxu0 0.0
        %532 = vmatpush.xpose.msra.mxu0 0.0
        %533 = vmatpush.xpose.msra.mxu0 0.0
        %534 = vmatpush.xpose.msra.mxu0 0.0
        %535 = vmatpush.xpose.msra.mxu0 %v518
        %536 = vmatmul.f32.gmra.mxu0 %v515
        %v537 = vpop.f32.mrf.mxu0
        %v538 = vadd.f32 %v512, %v537
        %539 = vdwg.mxu0
        %v540 = vsel %vm513, %v538, -inf
        %541 = vmax.xlane.f32.xlu0 %v540
        %v542 = vpop.xlane.xlu0 %541
        %v543 = vsub.f32 %v538, %v542
        %v544 = vmul.f32 %v543, 1.442695
        %v545 = vpow.pop %v544
        %v546 = vsel %vm513, %v545, 0.0
        %547 = vadd.xlane.f32.xlu0 %v546
        %v548 = vpop.xlane.xlu0 %547
        %v549 = vrcp.pop %v548
        %v550 = vmul.f32 %v548, %v549
        %v551 = vsub.f32 1.0, %v550
        %v552 = vmul.f32 %v549, %v551
        %v553 = vadd.f32 %v549, %v552
        %vm554 = vweird.f32 %v548
        %vm555 = vweird.f32 %v549
        %vm556 = vmor %vm554, %vm555
        %v557 = vsel %vm556, %v549, %v553
        %v558 = vand.u32 2147483647, %v548
        %vm559 = vcmp.eq.f32.partialorder %v558, 8.507059e+37
        %v560 = vand.u32 %v548, 2147483648
        %v561 = vor.u32 1.1754944e-38, %v560
        %v562 = vsel %vm559, %v561, %v557
        %v563 = vmul.f32 %v545, %v562
        %564 = vst.msk [vmem:[%s408] sm:$0xff] %vm513, %v563
        %565 = vrot.lane.b32.xlu0 %v511, 96
        %v566 = vpop.permute.xlu0 %565
        %v569 = vsel %vm513, %v563, 0
        %571 = vmatpush.msra.mxu0 0.0
        %572 = vmatpush.msra.mxu0 0.0
        %573 = vmatpush.msra.mxu0 0.0
        %574 = vmatpush.msra.mxu0 0.0
        %575 = vmatpush.msra.mxu0 0.0
        %576 = vmatpush.msra.mxu0 0.0
        %577 = vmatpush.msra.mxu0 0.0
        %578 = vmatpush.msra.mxu0 0.0
        %579 = vmatpush.msra.mxu0 0.0
        %580 = vmatpush.msra.mxu0 0.0
        %581 = vmatpush.msra.mxu0 0.0
        %582 = vmatpush.msra.mxu0 0.0
        %583 = vmatpush.msra.mxu0 0.0
        %584 = vmatpush.msra.mxu0 0.0
        %585 = vmatpush.msra.mxu0 0.0
        %586 = vmatpush.msra.mxu0 %v566
        %587 = vmatmul.f32.gmra.mxu0 %v569
        %v588 = vpop.f32.mrf.mxu0
        %v589 = vadd.f32 0.0, %v588
        %590 = vdwg.mxu0
        %591 = vrot.lane.b32.xlu0 %v507, 120
        %v592 = vpop.permute.xlu0 %591
        %593 = vrot.lane.b32.xlu0 %v511, 120
        %v594 = vpop.permute.xlu0 %593
        %v595 = vsel %vm513, %v592, 0
        %v597 = vsel %vm513, %v594, 0
        %599 = vmatpush.xpose.msra.mxu0 0.0
        %600 = vmatpush.xpose.msra.mxu0 0.0
        %601 = vmatpush.xpose.msra.mxu0 0.0
        %602 = vmatpush.xpose.msra.mxu0 0.0
        %603 = vmatpush.xpose.msra.mxu0 0.0
        %604 = vmatpush.xpose.msra.mxu0 0.0
        %605 = vmatpush.xpose.msra.mxu0 0.0
        %606 = vmatpush.xpose.msra.mxu0 0.0
        %607 = vmatpush.xpose.msra.mxu0 0.0
        %608 = vmatpush.xpose.msra.mxu0 0.0
        %609 = vmatpush.xpose.msra.mxu0 0.0
        %610 = vmatpush.xpose.msra.mxu0 0.0
        %611 = vmatpush.xpose.msra.mxu0 0.0
        %612 = vmatpush.xpose.msra.mxu0 0.0
        %613 = vmatpush.xpose.msra.mxu0 0.0
        %614 = vmatpush.xpose.msra.mxu0 %v597
        %615 = vmatmul.f32.gmra.mxu0 %v595
        %v616 = vpop.f32.mrf.mxu0
        %v617 = vadd.f32 %v512, %v616
        %618 = vdwg.mxu0
        %v619 = vsel %vm513, %v617, -inf
        %620 = vmax.xlane.f32.xlu0 %v619
        %v621 = vpop.xlane.xlu0 %620
        %v622 = vsub.f32 %v617, %v621
        %v623 = vmul.f32 %v622, 1.442695
        %v624 = vpow.pop %v623
        %v625 = vsel %vm513, %v624, 0.0
        %626 = vadd.xlane.f32.xlu0 %v625
        %v627 = vpop.xlane.xlu0 %626
        %v628 = vrcp.pop %v627
        %v629 = vmul.f32 %v627, %v628
        %v630 = vsub.f32 1.0, %v629
        %v631 = vmul.f32 %v628, %v630
        %v632 = vadd.f32 %v628, %v631
        %vm633 = vweird.f32 %v627
        %vm634 = vweird.f32 %v628
        %vm635 = vmor %vm633, %vm634
        %v636 = vsel %vm635, %v628, %v632
        %v637 = vand.u32 2147483647, %v627
        %vm638 = vcmp.eq.f32.partialorder %v637, 8.507059e+37
        %v639 = vand.u32 %v627, 2147483648
        %v640 = vor.u32 1.1754944e-38, %v639
        %v641 = vsel %vm638, %v640, %v636
        %v642 = vmul.f32 %v624, %v641
        %s643 = scalar_lea.vmem %s408, 8 [#allocation14]
        %644 = vst.msk [vmem:[%s643] sm:$0xff] %vm513, %v642
        %645 = vrot.lane.b32.xlu0 %v511, 88
        %v646 = vpop.permute.xlu0 %645
        %v649 = vsel %vm513, %v642, 0
        %651 = vmatpush.msra.mxu0 0.0
        %652 = vmatpush.msra.mxu0 0.0
        %653 = vmatpush.msra.mxu0 0.0
        %654 = vmatpush.msra.mxu0 0.0
        %655 = vmatpush.msra.mxu0 0.0
        %656 = vmatpush.msra.mxu0 0.0
        %657 = vmatpush.msra.mxu0 0.0
        %658 = vmatpush.msra.mxu0 0.0
        %659 = vmatpush.msra.mxu0 0.0
        %660 = vmatpush.msra.mxu0 0.0
        %661 = vmatpush.msra.mxu0 0.0
        %662 = vmatpush.msra.mxu0 0.0
        %663 = vmatpush.msra.mxu0 0.0
        %664 = vmatpush.msra.mxu0 0.0
        %665 = vmatpush.msra.mxu0 0.0
        %666 = vmatpush.msra.mxu0 %v646
        %667 = vmatmul.f32.gmra.mxu0 %v649
        %v668 = vpop.f32.mrf.mxu0
        %v669 = vadd.f32 0.0, %v668
        %670 = vdwg.mxu0
        %671 = vrot.lane.b32.xlu0 %v507, 112
        %v672 = vpop.permute.xlu0 %671
        %673 = vrot.lane.b32.xlu0 %v511, 112
        %v674 = vpop.permute.xlu0 %673
        %v675 = vsel %vm513, %v672, 0
        %v677 = vsel %vm513, %v674, 0
        %679 = vmatpush.xpose.msra.mxu0 0.0
        %680 = vmatpush.xpose.msra.mxu0 0.0
        %681 = vmatpush.xpose.msra.mxu0 0.0
        %682 = vmatpush.xpose.msra.mxu0 0.0
        %683 = vmatpush.xpose.msra.mxu0 0.0
        %684 = vmatpush.xpose.msra.mxu0 0.0
        %685 = vmatpush.xpose.msra.mxu0 0.0
        %686 = vmatpush.xpose.msra.mxu0 0.0
        %687 = vmatpush.xpose.msra.mxu0 0.0
        %688 = vmatpush.xpose.msra.mxu0 0.0
        %689 = vmatpush.xpose.msra.mxu0 0.0
        %690 = vmatpush.xpose.msra.mxu0 0.0
        %691 = vmatpush.xpose.msra.mxu0 0.0
        %692 = vmatpush.xpose.msra.mxu0 0.0
        %693 = vmatpush.xpose.msra.mxu0 0.0
        %694 = vmatpush.xpose.msra.mxu0 %v677
        %695 = vmatmul.f32.gmra.mxu0 %v675
        %v696 = vpop.f32.mrf.mxu0
        %v697 = vadd.f32 %v512, %v696
        %698 = vdwg.mxu0
        %v699 = vsel %vm513, %v697, -inf
        %700 = vmax.xlane.f32.xlu0 %v699
        %v701 = vpop.xlane.xlu0 %700
        %v702 = vsub.f32 %v697, %v701
        %v703 = vmul.f32 %v702, 1.442695
        %v704 = vpow.pop %v703
        %v705 = vsel %vm513, %v704, 0.0
        %706 = vadd.xlane.f32.xlu0 %v705
        %v707 = vpop.xlane.xlu0 %706
        %v708 = vrcp.pop %v707
        %v709 = vmul.f32 %v707, %v708
        %v710 = vsub.f32 1.0, %v709
        %v711 = vmul.f32 %v708, %v710
        %v712 = vadd.f32 %v708, %v711
        %vm713 = vweird.f32 %v707
        %vm714 = vweird.f32 %v708
        %vm715 = vmor %vm713, %vm714
        %v716 = vsel %vm715, %v708, %v712
        %v717 = vand.u32 2147483647, %v707
        %vm718 = vcmp.eq.f32.partialorder %v717, 8.507059e+37
        %v719 = vand.u32 %v707, 2147483648
        %v720 = vor.u32 1.1754944e-38, %v719
        %v721 = vsel %vm718, %v720, %v716
        %v722 = vmul.f32 %v704, %v721
        %s723 = scalar_lea.vmem %s408, 16 [#allocation14]
        %724 = vst.msk [vmem:[%s723] sm:$0xff] %vm513, %v722
        %725 = vrot.lane.b32.xlu0 %v511, 80
        %v726 = vpop.permute.xlu0 %725
        %v729 = vsel %vm513, %v722, 0
        %731 = vmatpush.msra.mxu0 0.0
        %732 = vmatpush.msra.mxu0 0.0
        %733 = vmatpush.msra.mxu0 0.0
        %734 = vmatpush.msra.mxu0 0.0
        %735 = vmatpush.msra.mxu0 0.0
        %736 = vmatpush.msra.mxu0 0.0
        %737 = vmatpush.msra.mxu0 0.0
        %738 = vmatpush.msra.mxu0 0.0
        %739 = vmatpush.msra.mxu0 0.0
        %740 = vmatpush.msra.mxu0 0.0
        %741 = vmatpush.msra.mxu0 0.0
        %742 = vmatpush.msra.mxu0 0.0
        %743 = vmatpush.msra.mxu0 0.0
        %744 = vmatpush.msra.mxu0 0.0
        %745 = vmatpush.msra.mxu0 0.0
        %746 = vmatpush.msra.mxu0 %v726
        %747 = vmatmul.f32.gmra.mxu0 %v729
        %v748 = vpop.f32.mrf.mxu0
        %v749 = vadd.f32 0.0, %v748
        %750 = vdwg.mxu0
        %751 = vrot.lane.b32.xlu0 %v507, 104
        %v752 = vpop.permute.xlu0 %751
        %753 = vrot.lane.b32.xlu0 %v511, 104
        %v754 = vpop.permute.xlu0 %753
        %v755 = vsel %vm513, %v752, 0
        %v757 = vsel %vm513, %v754, 0
        %759 = vmatpush.xpose.msra.mxu0 0.0
        %760 = vmatpush.xpose.msra.mxu0 0.0
        %761 = vmatpush.xpose.msra.mxu0 0.0
        %762 = vmatpush.xpose.msra.mxu0 0.0
        %763 = vmatpush.xpose.msra.mxu0 0.0
        %764 = vmatpush.xpose.msra.mxu0 0.0
        %765 = vmatpush.xpose.msra.mxu0 0.0
        %766 = vmatpush.xpose.msra.mxu0 0.0
        %767 = vmatpush.xpose.msra.mxu0 0.0
        %768 = vmatpush.xpose.msra.mxu0 0.0
        %769 = vmatpush.xpose.msra.mxu0 0.0
        %770 = vmatpush.xpose.msra.mxu0 0.0
        %771 = vmatpush.xpose.msra.mxu0 0.0
        %772 = vmatpush.xpose.msra.mxu0 0.0
        %773 = vmatpush.xpose.msra.mxu0 0.0
        %774 = vmatpush.xpose.msra.mxu0 %v757
        %775 = vmatmul.f32.gmra.mxu0 %v755
        %v776 = vpop.f32.mrf.mxu0
        %v777 = vadd.f32 %v512, %v776
        %778 = vdwg.mxu0
        %v779 = vsel %vm513, %v777, -inf
        %780 = vmax.xlane.f32.xlu0 %v779
        %v781 = vpop.xlane.xlu0 %780
        %v782 = vsub.f32 %v777, %v781
        %v783 = vmul.f32 %v782, 1.442695
        %v784 = vpow.pop %v783
        %v785 = vsel %vm513, %v784, 0.0
        %786 = vadd.xlane.f32.xlu0 %v785
        %v787 = vpop.xlane.xlu0 %786
        %v788 = vrcp.pop %v787
        %v789 = vmul.f32 %v787, %v788
        %v790 = vsub.f32 1.0, %v789
        %v791 = vmul.f32 %v788, %v790
        %v792 = vadd.f32 %v788, %v791
        %vm793 = vweird.f32 %v787
        %vm794 = vweird.f32 %v788
        %vm795 = vmor %vm793, %vm794
        %v796 = vsel %vm795, %v788, %v792
        %v797 = vand.u32 2147483647, %v787
        %vm798 = vcmp.eq.f32.partialorder %v797, 8.507059e+37
        %v799 = vand.u32 %v787, 2147483648
        %v800 = vor.u32 1.1754944e-38, %v799
        %v801 = vsel %vm798, %v800, %v796
        %v802 = vmul.f32 %v784, %v801
        %s803 = scalar_lea.vmem %s408, 24 [#allocation14]
        %804 = vst.msk [vmem:[%s803] sm:$0xff] %vm513, %v802
        %805 = vrot.lane.b32.xlu0 %v511, 72
        %v806 = vpop.permute.xlu0 %805
        %v809 = vsel %vm513, %v802, 0
        %811 = vmatpush.msra.mxu0 0.0
        %812 = vmatpush.msra.mxu0 0.0
        %813 = vmatpush.msra.mxu0 0.0
        %814 = vmatpush.msra.mxu0 0.0
        %815 = vmatpush.msra.mxu0 0.0
        %816 = vmatpush.msra.mxu0 0.0
        %817 = vmatpush.msra.mxu0 0.0
        %818 = vmatpush.msra.mxu0 0.0
        %819 = vmatpush.msra.mxu0 0.0
        %820 = vmatpush.msra.mxu0 0.0
        %821 = vmatpush.msra.mxu0 0.0
        %822 = vmatpush.msra.mxu0 0.0
        %823 = vmatpush.msra.mxu0 0.0
        %824 = vmatpush.msra.mxu0 0.0
        %825 = vmatpush.msra.mxu0 0.0
        %826 = vmatpush.msra.mxu0 %v806
        %827 = vmatmul.f32.gmra.mxu0 %v809
        %v828 = vpop.f32.mrf.mxu0
        %v829 = vadd.f32 0.0, %v828
        %830 = vdwg.mxu0
        %832 = vrot.lane.b32.xlu0 %v669, 8
        %v833 = vpop.permute.xlu0 %832
        %836 = vrot.lane.b32.xlu0 %v749, 16
        %v837 = vpop.permute.xlu0 %836
        %840 = vrot.lane.b32.xlu0 %v829, 24
        %v841 = vpop.permute.xlu0 %840
        %v843 = vsel %vm513, %v589, %v833
        %vm844 = vcmask 130048
        %v845 = vsel %vm844, %v843, %v837
        %vm846 = vcmask 195584
        %v847 = vsel %vm846, %v845, %v841
        %v848 = vld [vmem:[#allocation4] sm:$0xff]
        %s849 = scalar_lea.vmem [#allocation11], %s474
        %v850 = vld [vmem:[%s849] sm:$0xff]
        %v851 = vld [vmem:[%s849 + $0x8] sm:$0xff]
        %v852 = vld [vmem:[%s849 + $0x10] sm:$0xff]
        %v853 = vld [vmem:[%s849 + $0x18] sm:$0xff]
        %v855 = vsel %vm485, %v847, 0
        %857 = vmatpush.msra.mxu0 0.0
        %858 = vmatpush.msra.mxu0 0.0
        %859 = vmatpush.msra.mxu0 0.0
        %860 = vmatpush.msra.mxu0 0.0
        %861 = vmatpush.msra.mxu0 0.0
        %862 = vmatpush.msra.mxu0 0.0
        %863 = vmatpush.msra.mxu0 0.0
        %864 = vmatpush.msra.mxu0 0.0
        %865 = vmatpush.msra.mxu0 0.0
        %866 = vmatpush.msra.mxu0 0.0
        %867 = vmatpush.msra.mxu0 0.0
        %868 = vmatpush.msra.mxu0 0.0
        %869 = vmatpush.msra.mxu0 %v853
        %870 = vmatpush.msra.mxu0 %v852
        %871 = vmatpush.msra.mxu0 %v851
        %872 = vmatpush.msra.mxu0 %v850
        %873 = vmatmul.f32.gmra.mxu0 %v855
        %v874 = vpop.f32.mrf.mxu0
        %v875 = vadd.f32 0.0, %v874
        %876 = vdwg.mxu0
        %v877 = vadd.f32 %v848, %v875
        %878 = vst.msk [vmem:[#allocation4] sm:$0xff] %vm485, %v877
        // Predicated region
        $region73: #{tpu_custom_call.1} parent=47 // pred_check
          %p879 = pneg %p454
        $region74: #{tpu_custom_call.1} parent=47 // pred_check_branch
          %881 = sbr.rel (%p879) target = $region76
        $region75: #{tpu_custom_call.1} parent=47 // pred_region
          %v882 = vld [vmem:[#allocation4] sm:$0xff]
          %v883 = vld [vmem:[%s6] sm:$0x1]
          %v885 = vperm.slane %v883, 0
          %v887 = vadd.f32 %v882, %v885
          %888 = vst.msk [vmem:[%s401] sm:$0xff] %vm485, %v887
        $region76: #{tpu_custom_call.1} parent=47 // pred_fallthru
          _
        %s889 = sand.u32 %s212, 1
        %s890 = scalar_lea.sflag [#allocation7], %s889
        %s891 = sand.u32 %s212, 1
        %s892 = smul.addr %s891, 8
        %s893 = scalar_lea.vmem [#allocation13], %s892
        %s894 = sand.u32 %s242, 1
        %s895 = scalar_lea.sflag [#allocation15], %s894
        %s896 = sand.u32 %s242, 1
        %s897 = smul.addr %s896, 32
        %s898 = scalar_lea.vmem [#allocation14], %s897
        // Predicated region
        $region77: #{tpu_custom_call.1} parent=47 // pred_check
          %p899 = pneg %p222
        $region78: #{tpu_custom_call.1} parent=47 // pred_check_branch
          %901 = sbr.rel (%p899) target = $region80
        $region79: #{tpu_custom_call.1} parent=47 // pred_region
          %903 = vsyncadd %s890, 0
          %s904 = sadd.s32 %s37, %s36
          %s905 = smul.addr %s904, 8
          %s906 = scalar_lea.hbm %s7, %s905
          %s908 = sshll.u32 %s893, 4
          %s909 = int_to_ptr.vmem [resolvable:$true] %s908
          %s910 = sshll.u32 %s906, 4
          %s911 = int_to_ptr.hbm [resolvable:$true] %s910
          %913 = dma.vmem_to_hbm [thread:$0]  %s909, 128, %s911, %s890
        $region80: #{tpu_custom_call.1} parent=47 // pred_fallthru
          _
        // Predicated region
        $region81: #{tpu_custom_call.1} parent=47 // pred_check
          %p914 = pneg %p252
        $region82: #{tpu_custom_call.1} parent=47 // pred_check_branch
          %916 = sbr.rel (%p914) target = $region84
        $region83: #{tpu_custom_call.1} parent=47 // pred_region
          %s917 = smul.u32 4, %s38
          %919 = vsyncadd %s895, 0
          %s920 = sadd.s32 %s37, %s917
          %s921 = smul.addr %s36, 4
          %s922 = sadd.s32 %s920, %s921
          %s923 = smul.addr %s922, 8
          %s924 = scalar_lea.hbm %s8, %s923
          %s925 = sshll.u32 %s898, 4
          %s926 = int_to_ptr.vmem [resolvable:$true] %s925
          %s927 = sshll.u32 %s924, 4
          %s928 = int_to_ptr.hbm [resolvable:$true] %s927
          %933 = dma.vmem_to_hbm [thread:$0]  %s926, 512, %s928, %s895, 128, 128, 8
        $region84: #{tpu_custom_call.1} parent=47 // pred_fallthru
          _
      $region48: #{tpu_custom_call.1} parent=5 // pred_fallthru
        _
      %p934 = scmp.le.s32.totalorder 2, %s26
      // Predicated region
      $region85: #{tpu_custom_call.1} parent=5 // pred_check
        %p935 = pneg %p934
      $region86: #{tpu_custom_call.1} parent=5 // pred_check_branch
        %937 = sbr.rel (%p935) target = $region88
      $region87: #{tpu_custom_call.1} parent=5 // pred_region
        %s938 = ssub.s32 %s26, 2
        // Predicated region
        $region89: #{tpu_custom_call.1} parent=87 // pred_check
          %p939 = pneg %p228
        $region90: #{tpu_custom_call.1} parent=87 // pred_check_branch
          %941 = sbr.rel (%p939) target = $region92
        $region91: #{tpu_custom_call.1} parent=87 // pred_region
          %s942 = sand.u32 %s213, 1
          %s943 = scalar_lea.sflag [#allocation7], %s942
          %s944 = sand.u32 %s213, 1
          %s945 = smul.addr %s944, 8
          %s946 = scalar_lea.vmem [#allocation13], %s945
          %948 = dma.done %s943, 128
        $region92: #{tpu_custom_call.1} parent=87 // pred_fallthru
          _
        // Predicated region
        $region93: #{tpu_custom_call.1} parent=87 // pred_check
          %p949 = pneg %p258
        $region94: #{tpu_custom_call.1} parent=87 // pred_check_branch
          %951 = sbr.rel (%p949) target = $region96
        $region95: #{tpu_custom_call.1} parent=87 // pred_region
          %s952 = sand.u32 %s243, 1
          %s953 = scalar_lea.sflag [#allocation15], %s952
          %s954 = sand.u32 %s243, 1
          %s955 = smul.addr %s954, 32
          %s956 = scalar_lea.vmem [#allocation14], %s955
          %958 = dma.done %s953, 512
        $region96: #{tpu_custom_call.1} parent=87 // pred_fallthru
          _
      $region88: #{tpu_custom_call.1} parent=5 // pred_fallthru
        _
    $region6: #{tpu_custom_call.1} parent=1 // loop_footer
      %s30 = sadd.s32 1, %s26
    $region7: #{tpu_custom_call.1} parent=1 // loop_footer_branch
      %25 = sbr.rel target = $region3
    $region8: #{tpu_custom_call.1} parent=1 // loop_exit
      _
    %959 = vsyncpa [#allocation6], 1
    %s960 = scalar_lea.sflag [#allocation6], 1
    %961 = vsyncpa %s960, 1
    %962 = vsyncpa [#allocation9], 1
    %963 = vsyncpa [#allocation12], 1
    %964 = vsyncpa [#allocation7], 1
    %s965 = scalar_lea.sflag [#allocation7], 1
    %966 = vsyncpa %s965, 1
    %967 = vsyncpa [#allocation15], 1
    %s968 = scalar_lea.sflag [#allocation15], 1
    %969 = vsyncpa %s968, 1

</llo_original>
